<compile_context>
chip_gen: v7x
topology: tpu7x:2x2x1
jax: 0.10.0
libtpu: 0.0.40
codegen_flags: <defaults>
</compile_context>

<pallas_src>
import jax
import jax.numpy as jnp
from jax.experimental import pallas as pl
from jax.experimental.pallas import tpu as pltpu


# ---------------------------------------------------------------------------
# Kernel
# ---------------------------------------------------------------------------
def deeponet_kernel(x_ref, w1_ref, w_ref, b_ref, out_ref):
    """Fused branch+trunk+mix MLP on one (tb, nb+nt) batch tile.

    w_ref : (8, 2U, 2U) stacked weights  [mid1..mid4, w6_branch, w6_trunk, wm1, wm2]
    b_ref : (9, 1, 2U)  stacked biases   [b1, bmid1..4, b6_b, b6_t, bm1, bm2]
    """
    f32 = jnp.float32

    def dense(x, w, b, relu):
        h = jnp.dot(x.astype(w.dtype), w, preferred_element_type=f32)
        h = h.astype(b.dtype) + b
        return jnp.maximum(h, 0.0) if relu else h

    n_hidden = w_ref.shape[0] - 4          # block-diagonal ReLU layers

    # Layer 1: fused (branch | trunk) input -> 2U lanes.
    h = dense(x_ref[...], w1_ref[...], b_ref[0], relu=True)

    # Block-diagonal hidden layers (branch lanes [0:U], trunk lanes [U:2U]).
    for k in range(n_hidden):
        h = dense(h, w_ref[k], b_ref[k + 1], relu=True)

    # Final branch / trunk projections, both lane-0-aligned (no lane shuffles).
    bo = dense(h, w_ref[n_hidden], b_ref[n_hidden + 1], relu=False)
    to = dense(h, w_ref[n_hidden + 1], b_ref[n_hidden + 2], relu=False)
    comb = bo * to                          # lanes [0:num_mid] valid, rest 0

    # Mix MLP (weights zero-padded to 2U; padded lanes stay exactly 0).
    m = dense(comb, w_ref[n_hidden + 2], b_ref[n_hidden + 3], relu=True)
    m = dense(m, w_ref[n_hidden + 3], b_ref[n_hidden + 4], relu=False)

    out_ref[...] = m[:, : out_ref.shape[1]].astype(out_ref.dtype)


# ---------------------------------------------------------------------------
# Parameter packing (block-diagonal fusion, stacked weight / bias slabs)
# ---------------------------------------------------------------------------
def _default_act_dtype():
    """bf16 activations only on v6e / v7x (native bf16 VPU); f32 elsewhere."""
    try:
        kind = jax.devices()[0].device_kind.lower()
    except Exception:
        return jnp.float32
    return jnp.bfloat16 if any(t in kind for t in ("v6", "v7", "7x")) else jnp.float32


def pack_params(params, weight_dtype=jnp.bfloat16, act_dtype=None):
    """params: 14 (W:(in,out), b:(out,)) pairs -> 6 branch, 6 trunk, 2 mix."""
    if act_dtype is None:
        act_dtype = _default_act_dtype()
    f32 = jnp.float32
    bp, tp, mp = params[0:6], params[6:12], params[12:14]

    U = bp[1][0].shape[0]          # hidden width per tower
    U2 = 2 * U
    num_mid = bp[5][0].shape[1]
    num_out = mp[1][0].shape[1]

    def blkdiag(a, b):
        out = jnp.zeros((a.shape[0] + b.shape[0], a.shape[1] + b.shape[1]), f32)
        out = out.at[: a.shape[0], : a.shape[1]].set(a)
        out = out.at[a.shape[0]:, a.shape[1]:].set(b)
        return out

    def pad_w(w, r0=0):
        return jnp.zeros((U2, U2), f32).at[r0:r0 + w.shape[0], : w.shape[1]].set(w)

    def pad_b(b):
        return jnp.zeros((U2,), f32).at[: b.shape[0]].set(b)

    # Fused layer 1: (nb + nt) -> 2U, block-diagonal.
    w1 = blkdiag(bp[0][0], tp[0][0])
    b1 = jnp.concatenate([bp[0][1], tp[0][1]])

    w_stack = [blkdiag(bp[k][0], tp[k][0]) for k in range(1, 5)]          # mids
    b_stack = [b1] + [jnp.concatenate([bp[k][1], tp[k][1]]) for k in range(1, 5)]

    w_stack.append(pad_w(bp[5][0], r0=0))   # branch -> num_mid (rows [0:U])
    b_stack.append(pad_b(bp[5][1]))
    w_stack.append(pad_w(tp[5][0], r0=U))   # trunk  -> num_mid (rows [U:2U])
    b_stack.append(pad_b(tp[5][1]))
    w_stack.append(pad_w(mp[0][0], r0=0))   # mix layer 1: num_mid -> U
    b_stack.append(pad_b(mp[0][1]))
    w_stack.append(pad_w(mp[1][0], r0=0))   # mix layer 2: U -> num_out
    b_stack.append(pad_b(mp[1][1]))

    return dict(
        w1=w1.astype(weight_dtype),
        w_stack=jnp.stack(w_stack).astype(weight_dtype),
        b_stack=jnp.stack(b_stack)[:, None, :].astype(act_dtype),
        num_out=num_out,
        num_mid=num_mid,
    )


# ---------------------------------------------------------------------------
# Wrapper
# ---------------------------------------------------------------------------
def deeponet_forward(branch_input, trunk_input, packed, *, tb=None):
    # Mirror the PyTorch 1-D / broadcast semantics.
    if branch_input.ndim == 1:
        branch_input = branch_input[None, :]
    if trunk_input.ndim == 1:
        trunk_input = trunk_input[None, :]
    B = max(branch_input.shape[0], trunk_input.shape[0])
    if branch_input.shape[0] == 1 and B > 1:
        # TODO(synk): broadcast path still recomputes the branch MLP per row;
        # folding the single-row branch output into the mix weights would avoid it.
        branch_input = jnp.broadcast_to(branch_input, (B, branch_input.shape[1]))
    if trunk_input.shape[0] == 1 and B > 1:
        trunk_input = jnp.broadcast_to(trunk_input, (B, trunk_input.shape[1]))

    # One fused, lane-contiguous input operand (kills the 12 B/row trunk DMA).
    xin = jnp.concatenate([branch_input.astype(jnp.float32),
                           trunk_input.astype(jnp.float32)], axis=1)
    n_in = xin.shape[1]

    w1, w_stack, b_stack = packed["w1"], packed["w_stack"], packed["b_stack"]
    num_out = packed["num_out"]
    num_mid = packed["num_mid"]
    U2 = w1.shape[1]
    U = U2 // 2

    def rup(x, m):
        return ((x + m - 1) // m) * m

    if tb is None:
        # Big sublane-aligned batch tiles, but keep >= 2 grid steps whenever
        # possible so the "parallel" axis can use both v7x TensorCores.
        tb = min(1024, max(8, rup(pl.cdiv(B, 2), 8)))
    tb = max(8, rup(min(tb, rup(B, 8)), 8))
    grid = (pl.cdiv(B, tb),)

    def whole(arr):
        nd = arr.ndim
        return pl.BlockSpec(arr.shape, lambda i, _n=nd: (0,) * _n)

    in_specs = [pl.BlockSpec((tb, n_in), lambda i: (i, 0)),
                whole(w1), whole(w_stack), whole(b_stack)]
    out_spec = pl.BlockSpec((tb, num_out), lambda i: (i, 0))

    # Advisory cost estimate (unpadded math).
    flops = 2 * B * (n_in * U2 + 4 * U2 * U2 + 2 * U2 * num_mid
                     + num_mid * U + U * num_out)
    weight_bytes = sum(int(a.size) * a.dtype.itemsize
                       for a in (w1, w_stack, b_stack))
    bytes_accessed = int(xin.size) * 4 + B * num_out * 4 + weight_bytes

    return pl.pallas_call(
        deeponet_kernel,
        out_shape=jax.ShapeDtypeStruct((B, num_out), jnp.float32),
        grid_spec=pltpu.PrefetchScalarGridSpec(
            num_scalar_prefetch=0,
            grid=grid,
            in_specs=in_specs,
            out_specs=out_spec,
        ),
        compiler_params=pltpu.CompilerParams(
            dimension_semantics=("parallel",)),
        cost_estimate=pl.CostEstimate(
            flops=int(flops), transcendentals=0,
            bytes_accessed=int(bytes_accessed)),
    )(xin, w1, w_stack, b_stack)


# ---------------------------------------------------------------------------
# Parameter construction & plain-JAX reference
# ---------------------------------------------------------------------------
def make_params(key, units, num_mid, num_probes):
    branch_dims = [num_probes * 3] + [units] * 5 + [num_mid]
    trunk_dims = [3] + [units] * 5 + [num_mid]
    mix_dims = [num_mid, units, 3]

    all_dims = (list(zip(branch_dims[:-1], branch_dims[1:]))
                + list(zip(trunk_dims[:-1], trunk_dims[1:]))
                + list(zip(mix_dims[:-1], mix_dims[1:])))
    params = []
    for (d_in, d_out) in all_dims:
        key, kw, kb = jax.random.split(key, 3)
        scale = 1.0 / jnp.sqrt(jnp.float32(d_in))
        w = jax.random.uniform(kw, (d_in, d_out), jnp.float32, -scale, scale)
        b = jax.random.uniform(kb, (d_out,), jnp.float32, -scale, scale)
        params.append((w, b))
    return params


def reference_forward(branch_input, trunk_input, params):
    def mlp(x, ps):
        h = x
        for i, (w, b) in enumerate(ps):
            h = h @ w + b
            if i < len(ps) - 1:
                h = jnp.maximum(h, 0.0)
        return h

    bo = mlp(branch_input, params[0:6])
    to = mlp(trunk_input, params[6:12])
    return mlp(bo * to, params[12:14])


# ---------------------------------------------------------------------------
if __name__ == "__main__":
    units = 32
    num_mid = 16
    num_probes = 8          # probes_pos would be shape (8, 3)
    batch = 64

    key = jax.random.PRNGKey(0)
    key, kb_in, kt_in = jax.random.split(key, 3)

    branch_input = jax.random.normal(kb_in, (batch, num_probes * 3), jnp.float32)
    trunk_input = jax.random.normal(kt_in, (batch, 3), jnp.float32)
    params = make_params(key, units, num_mid, num_probes)

    with jax.default_matmul_precision("highest"):
        ref = reference_forward(branch_input, trunk_input, params)

    # f32 weights & activations: structural check (tight tolerance).
    packed_f32 = pack_params(params, weight_dtype=jnp.float32,
                             act_dtype=jnp.float32)
    out_f32 = jax.block_until_ready(
        deeponet_forward(branch_input, trunk_input, packed_f32, tb=32))
    assert out_f32.shape == (batch, 3)
    assert bool(jnp.allclose(out_f32, ref, atol=1e-3, rtol=1e-3)), "f32 mismatch"

    # Default fast path: bf16 weights, activation dtype chosen per chip.
    packed_fast = pack_params(params)
    out_fast = jax.block_until_ready(
        deeponet_forward(branch_input, trunk_input, packed_fast))
    assert out_fast.shape == (batch, 3)
    assert bool(jnp.all(jnp.isfinite(out_fast)))
    assert bool(jnp.allclose(out_fast, ref, atol=2e-1, rtol=2e-1)), "bf16 mismatch"

    print("KERNEL_OK")
</pallas_src>

<mosaic_0001>
module attributes {stable_mosaic.version = 11 : i64} {
  func.func @deeponet_kernel(%arg0: i32, %arg1: memref<32x27xf32, #tpu.memory_space<vmem>>, %arg2: memref<27x64xf32, #tpu.memory_space<vmem>>, %arg3: memref<8x64x64xf32, #tpu.memory_space<vmem>>, %arg4: memref<9x1x64xf32, #tpu.memory_space<vmem>>, %arg5: memref<32x3xf32, #tpu.memory_space<vmem>>) attributes {dimension_semantics = [#tpu.dimension_semantics<parallel>], iteration_bounds = array<i64: 2>, scalar_prefetch = 0 : i64, scratch_operands = 0 : i64, tpu.core_type = #tpu.core_type<tc>, window_params = [{transform_indices = @transform_0, window_bounds = array<i64: 32, 27>}, {pipeline_mode = #tpu.pipeline_mode<synchronous>, transform_indices = @transform_1, window_bounds = array<i64: 27, 64>}, {pipeline_mode = #tpu.pipeline_mode<synchronous>, transform_indices = @transform_2, window_bounds = array<i64: 8, 64, 64>}, {pipeline_mode = #tpu.pipeline_mode<synchronous>, transform_indices = @transform_3, window_bounds = array<i64: 9, 1, 64>}, {transform_indices = @transform_4, window_bounds = array<i64: 32, 3>}]} {
    %c0 = arith.constant 0 : index
    %c0_0 = arith.constant 0 : index
    %0 = vector.load %arg1[%c0, %c0_0] : memref<32x27xf32, #tpu.memory_space<vmem>>, vector<32x27xf32>
    %c0_1 = arith.constant 0 : index
    %c0_2 = arith.constant 0 : index
    %1 = vector.load %arg2[%c0_1, %c0_2] : memref<27x64xf32, #tpu.memory_space<vmem>>, vector<27x64xf32>
    %c0_3 = arith.constant 0 : index
    %c0_4 = arith.constant 0 : index
    %c0_5 = arith.constant 0 : index
    %2 = vector.load %arg4[%c0_3, %c0_4, %c0_5] : memref<9x1x64xf32, #tpu.memory_space<vmem>>, vector<1x1x64xf32>
    %3 = vector.shape_cast %2 : vector<1x1x64xf32> to vector<1x64xf32>
    %cst = arith.constant dense<0.000000e+00> : vector<32x64xf32>
    %4 = tpu.matmul %0, %1, %cst {dimension_numbers = #tpu.dot_dimension_numbers<[1], [0], [0], [1], [0, 0, 1, 1], [], []>} : vector<32x27xf32>, vector<27x64xf32>, vector<32x64xf32> -> vector<32x64xf32>
    %5 = vector.broadcast %3 : vector<1x64xf32> to vector<32x64xf32>
    %6 = arith.addf %4, %5 : vector<32x64xf32>
    %cst_6 = arith.constant 0.000000e+00 : f32
    %7 = vector.broadcast %cst_6 : f32 to vector<32x64xf32>
    %8 = arith.maximumf %6, %7 : vector<32x64xf32>
    %c0_7 = arith.constant 0 : index
    %c0_8 = arith.constant 0 : index
    %c0_9 = arith.constant 0 : index
    %9 = vector.load %arg3[%c0_7, %c0_8, %c0_9] : memref<8x64x64xf32, #tpu.memory_space<vmem>>, vector<1x64x64xf32>
    %10 = vector.shape_cast %9 : vector<1x64x64xf32> to vector<64x64xf32>
    %c1 = arith.constant 1 : index
    %c0_10 = arith.constant 0 : index
    %c0_11 = arith.constant 0 : index
    %11 = vector.load %arg4[%c1, %c0_10, %c0_11] : memref<9x1x64xf32, #tpu.memory_space<vmem>>, vector<1x1x64xf32>
    %12 = vector.shape_cast %11 : vector<1x1x64xf32> to vector<1x64xf32>
    %cst_12 = arith.constant dense<0.000000e+00> : vector<32x64xf32>
    %13 = tpu.matmul %8, %10, %cst_12 {dimension_numbers = #tpu.dot_dimension_numbers<[1], [0], [0], [1], [0, 0, 1, 1], [], []>} : vector<32x64xf32>, vector<64x64xf32>, vector<32x64xf32> -> vector<32x64xf32>
    %14 = vector.broadcast %12 : vector<1x64xf32> to vector<32x64xf32>
    %15 = arith.addf %13, %14 : vector<32x64xf32>
    %cst_13 = arith.constant 0.000000e+00 : f32
    %16 = vector.broadcast %cst_13 : f32 to vector<32x64xf32>
    %17 = arith.maximumf %15, %16 : vector<32x64xf32>
    %c1_14 = arith.constant 1 : index
    %c0_15 = arith.constant 0 : index
    %c0_16 = arith.constant 0 : index
    %18 = vector.load %arg3[%c1_14, %c0_15, %c0_16] : memref<8x64x64xf32, #tpu.memory_space<vmem>>, vector<1x64x64xf32>
    %19 = vector.shape_cast %18 : vector<1x64x64xf32> to vector<64x64xf32>
    %c2 = arith.constant 2 : index
    %c0_17 = arith.constant 0 : index
    %c0_18 = arith.constant 0 : index
    %20 = vector.load %arg4[%c2, %c0_17, %c0_18] : memref<9x1x64xf32, #tpu.memory_space<vmem>>, vector<1x1x64xf32>
    %21 = vector.shape_cast %20 : vector<1x1x64xf32> to vector<1x64xf32>
    %cst_19 = arith.constant dense<0.000000e+00> : vector<32x64xf32>
    %22 = tpu.matmul %17, %19, %cst_19 {dimension_numbers = #tpu.dot_dimension_numbers<[1], [0], [0], [1], [0, 0, 1, 1], [], []>} : vector<32x64xf32>, vector<64x64xf32>, vector<32x64xf32> -> vector<32x64xf32>
    %23 = vector.broadcast %21 : vector<1x64xf32> to vector<32x64xf32>
    %24 = arith.addf %22, %23 : vector<32x64xf32>
    %cst_20 = arith.constant 0.000000e+00 : f32
    %25 = vector.broadcast %cst_20 : f32 to vector<32x64xf32>
    %26 = arith.maximumf %24, %25 : vector<32x64xf32>
    %c2_21 = arith.constant 2 : index
    %c0_22 = arith.constant 0 : index
    %c0_23 = arith.constant 0 : index
    %27 = vector.load %arg3[%c2_21, %c0_22, %c0_23] : memref<8x64x64xf32, #tpu.memory_space<vmem>>, vector<1x64x64xf32>
    %28 = vector.shape_cast %27 : vector<1x64x64xf32> to vector<64x64xf32>
    %c3 = arith.constant 3 : index
    %c0_24 = arith.constant 0 : index
    %c0_25 = arith.constant 0 : index
    %29 = vector.load %arg4[%c3, %c0_24, %c0_25] : memref<9x1x64xf32, #tpu.memory_space<vmem>>, vector<1x1x64xf32>
    %30 = vector.shape_cast %29 : vector<1x1x64xf32> to vector<1x64xf32>
    %cst_26 = arith.constant dense<0.000000e+00> : vector<32x64xf32>
    %31 = tpu.matmul %26, %28, %cst_26 {dimension_numbers = #tpu.dot_dimension_numbers<[1], [0], [0], [1], [0, 0, 1, 1], [], []>} : vector<32x64xf32>, vector<64x64xf32>, vector<32x64xf32> -> vector<32x64xf32>
    %32 = vector.broadcast %30 : vector<1x64xf32> to vector<32x64xf32>
    %33 = arith.addf %31, %32 : vector<32x64xf32>
    %cst_27 = arith.constant 0.000000e+00 : f32
    %34 = vector.broadcast %cst_27 : f32 to vector<32x64xf32>
    %35 = arith.maximumf %33, %34 : vector<32x64xf32>
    %c3_28 = arith.constant 3 : index
    %c0_29 = arith.constant 0 : index
    %c0_30 = arith.constant 0 : index
    %36 = vector.load %arg3[%c3_28, %c0_29, %c0_30] : memref<8x64x64xf32, #tpu.memory_space<vmem>>, vector<1x64x64xf32>
    %37 = vector.shape_cast %36 : vector<1x64x64xf32> to vector<64x64xf32>
    %c4 = arith.constant 4 : index
    %c0_31 = arith.constant 0 : index
    %c0_32 = arith.constant 0 : index
    %38 = vector.load %arg4[%c4, %c0_31, %c0_32] : memref<9x1x64xf32, #tpu.memory_space<vmem>>, vector<1x1x64xf32>
    %39 = vector.shape_cast %38 : vector<1x1x64xf32> to vector<1x64xf32>
    %cst_33 = arith.constant dense<0.000000e+00> : vector<32x64xf32>
    %40 = tpu.matmul %35, %37, %cst_33 {dimension_numbers = #tpu.dot_dimension_numbers<[1], [0], [0], [1], [0, 0, 1, 1], [], []>} : vector<32x64xf32>, vector<64x64xf32>, vector<32x64xf32> -> vector<32x64xf32>
    %41 = vector.broadcast %39 : vector<1x64xf32> to vector<32x64xf32>
    %42 = arith.addf %40, %41 : vector<32x64xf32>
    %cst_34 = arith.constant 0.000000e+00 : f32
    %43 = vector.broadcast %cst_34 : f32 to vector<32x64xf32>
    %44 = arith.maximumf %42, %43 : vector<32x64xf32>
    %c4_35 = arith.constant 4 : index
    %c0_36 = arith.constant 0 : index
    %c0_37 = arith.constant 0 : index
    %45 = vector.load %arg3[%c4_35, %c0_36, %c0_37] : memref<8x64x64xf32, #tpu.memory_space<vmem>>, vector<1x64x64xf32>
    %46 = vector.shape_cast %45 : vector<1x64x64xf32> to vector<64x64xf32>
    %c5 = arith.constant 5 : index
    %c0_38 = arith.constant 0 : index
    %c0_39 = arith.constant 0 : index
    %47 = vector.load %arg4[%c5, %c0_38, %c0_39] : memref<9x1x64xf32, #tpu.memory_space<vmem>>, vector<1x1x64xf32>
    %48 = vector.shape_cast %47 : vector<1x1x64xf32> to vector<1x64xf32>
    %cst_40 = arith.constant dense<0.000000e+00> : vector<32x64xf32>
    %49 = tpu.matmul %44, %46, %cst_40 {dimension_numbers = #tpu.dot_dimension_numbers<[1], [0], [0], [1], [0, 0, 1, 1], [], []>} : vector<32x64xf32>, vector<64x64xf32>, vector<32x64xf32> -> vector<32x64xf32>
    %50 = vector.broadcast %48 : vector<1x64xf32> to vector<32x64xf32>
    %51 = arith.addf %49, %50 : vector<32x64xf32>
    %c5_41 = arith.constant 5 : index
    %c0_42 = arith.constant 0 : index
    %c0_43 = arith.constant 0 : index
    %52 = vector.load %arg3[%c5_41, %c0_42, %c0_43] : memref<8x64x64xf32, #tpu.memory_space<vmem>>, vector<1x64x64xf32>
    %53 = vector.shape_cast %52 : vector<1x64x64xf32> to vector<64x64xf32>
    %c6 = arith.constant 6 : index
    %c0_44 = arith.constant 0 : index
    %c0_45 = arith.constant 0 : index
    %54 = vector.load %arg4[%c6, %c0_44, %c0_45] : memref<9x1x64xf32, #tpu.memory_space<vmem>>, vector<1x1x64xf32>
    %55 = vector.shape_cast %54 : vector<1x1x64xf32> to vector<1x64xf32>
    %cst_46 = arith.constant dense<0.000000e+00> : vector<32x64xf32>
    %56 = tpu.matmul %44, %53, %cst_46 {dimension_numbers = #tpu.dot_dimension_numbers<[1], [0], [0], [1], [0, 0, 1, 1], [], []>} : vector<32x64xf32>, vector<64x64xf32>, vector<32x64xf32> -> vector<32x64xf32>
    %57 = vector.broadcast %55 : vector<1x64xf32> to vector<32x64xf32>
    %58 = arith.addf %56, %57 : vector<32x64xf32>
    %59 = arith.mulf %51, %58 : vector<32x64xf32>
    %c6_47 = arith.constant 6 : index
    %c0_48 = arith.constant 0 : index
    %c0_49 = arith.constant 0 : index
    %60 = vector.load %arg3[%c6_47, %c0_48, %c0_49] : memref<8x64x64xf32, #tpu.memory_space<vmem>>, vector<1x64x64xf32>
    %61 = vector.shape_cast %60 : vector<1x64x64xf32> to vector<64x64xf32>
    %c7 = arith.constant 7 : index
    %c0_50 = arith.constant 0 : index
    %c0_51 = arith.constant 0 : index
    %62 = vector.load %arg4[%c7, %c0_50, %c0_51] : memref<9x1x64xf32, #tpu.memory_space<vmem>>, vector<1x1x64xf32>
    %63 = vector.shape_cast %62 : vector<1x1x64xf32> to vector<1x64xf32>
    %cst_52 = arith.constant dense<0.000000e+00> : vector<32x64xf32>
    %64 = tpu.matmul %59, %61, %cst_52 {dimension_numbers = #tpu.dot_dimension_numbers<[1], [0], [0], [1], [0, 0, 1, 1], [], []>} : vector<32x64xf32>, vector<64x64xf32>, vector<32x64xf32> -> vector<32x64xf32>
    %65 = vector.broadcast %63 : vector<1x64xf32> to vector<32x64xf32>
    %66 = arith.addf %64, %65 : vector<32x64xf32>
    %cst_53 = arith.constant 0.000000e+00 : f32
    %67 = vector.broadcast %cst_53 : f32 to vector<32x64xf32>
    %68 = arith.maximumf %66, %67 : vector<32x64xf32>
    %c7_54 = arith.constant 7 : index
    %c0_55 = arith.constant 0 : index
    %c0_56 = arith.constant 0 : index
    %69 = vector.load %arg3[%c7_54, %c0_55, %c0_56] : memref<8x64x64xf32, #tpu.memory_space<vmem>>, vector<1x64x64xf32>
    %70 = vector.shape_cast %69 : vector<1x64x64xf32> to vector<64x64xf32>
    %c8 = arith.constant 8 : index
    %c0_57 = arith.constant 0 : index
    %c0_58 = arith.constant 0 : index
    %71 = vector.load %arg4[%c8, %c0_57, %c0_58] : memref<9x1x64xf32, #tpu.memory_space<vmem>>, vector<1x1x64xf32>
    %72 = vector.shape_cast %71 : vector<1x1x64xf32> to vector<1x64xf32>
    %cst_59 = arith.constant dense<0.000000e+00> : vector<32x64xf32>
    %73 = tpu.matmul %68, %70, %cst_59 {dimension_numbers = #tpu.dot_dimension_numbers<[1], [0], [0], [1], [0, 0, 1, 1], [], []>} : vector<32x64xf32>, vector<64x64xf32>, vector<32x64xf32> -> vector<32x64xf32>
    %74 = vector.broadcast %72 : vector<1x64xf32> to vector<32x64xf32>
    %75 = arith.addf %73, %74 : vector<32x64xf32>
    %76 = vector.extract_strided_slice %75 {offsets = [0, 0], sizes = [32, 3], strides = [1, 1]} : vector<32x64xf32> to vector<32x3xf32>
    %c0_60 = arith.constant 0 : index
    %c0_61 = arith.constant 0 : index
    %77 = vector.load %arg5[%c0_60, %c0_61] : memref<32x3xf32, #tpu.memory_space<vmem>>, vector<32x3xf32>
    tpu.vector_store %arg5[%c0_60, %c0_61], %76 {strides = array<i32>} : memref<32x3xf32, #tpu.memory_space<vmem>>, vector<32x3xf32>,
    return
  }
  func.func @transform_0(%arg0: i32) -> (i32, i32) {
    %c0_i32 = arith.constant 0 : i32
    %c0_i32_0 = arith.constant 0 : i32
    return %arg0, %c0_i32 : i32, i32
  }
  func.func @transform_1(%arg0: i32) -> (i32, i32) {
    %c0_i32 = arith.constant 0 : i32
    %c0_i32_0 = arith.constant 0 : i32
    %c0_i32_1 = arith.constant 0 : i32
    return %c0_i32, %c0_i32_0 : i32, i32
  }
  func.func @transform_2(%arg0: i32) -> (i32, i32, i32) {
    %c0_i32 = arith.constant 0 : i32
    %c0_i32_0 = arith.constant 0 : i32
    %c0_i32_1 = arith.constant 0 : i32
    %c0_i32_2 = arith.constant 0 : i32
    return %c0_i32, %c0_i32_0, %c0_i32_1 : i32, i32, i32
  }
  func.func @transform_3(%arg0: i32) -> (i32, i32, i32) {
    %c0_i32 = arith.constant 0 : i32
    %c0_i32_0 = arith.constant 0 : i32
    %c0_i32_1 = arith.constant 0 : i32
    %c0_i32_2 = arith.constant 0 : i32
    return %c0_i32, %c0_i32_0, %c0_i32_1 : i32, i32, i32
  }
  func.func @transform_4(%arg0: i32) -> (i32, i32) {
    %c0_i32 = arith.constant 0 : i32
    %c0_i32_0 = arith.constant 0 : i32
    return %arg0, %c0_i32 : i32, i32
  }
}

</mosaic_0001>

<llo_original>
// kernel: tpu_custom_call.1
$region0: #{tpu_custom_call.1}
  #allocation0 [shape = 'u32[]', space=smem, size = 0x4, offset = 0x4, fixed_abs, tag = 'smem constant byte address 0x4 - core index']
  #allocation1 [shape = 'u32[144,128]{1,0:T(1,128)}', space=vmem, size = 0x12000, scoped, tag = 'internal scratch']
  %s0 = inlined_call_operand.vmem [shape: f32[64,27], index: 0, kind: input, shape index: {}]
  %s1 = inlined_call_operand.vmem [shape: f32[27,64], index: 1, kind: input, shape index: {}]
  %s2 = inlined_call_operand.hbm [shape: f32[8,64,64], index: 2, kind: input, shape index: {}]
  %s3 = inlined_call_operand.vmem [shape: f32[9,1,64], index: 3, kind: input, shape index: {}]
  %s4 = inlined_call_operand.vmem [shape: f32[64,3], index: 4, kind: output, shape index: {}]
  %s5 = sld [smem:[#allocation0]]
  $region53: #{tpu_custom_call.1} parent=0
    _
  %s7 = ssub.s32 1, %s5
  %s8 = scalar_select 0, %s7, %s5
  $region1: #{tpu_custom_call.1} parent=0
    #allocation2 [shape = 'u8[262144]{0}', space=vmem, size = 0x40000, scoped, tag = 'input window, operand 2, single buffered']
    #allocation3 [shape = 's32[2]{0}', space=sflag, size = 0x8, scoped, tag = 'scoped memory for tpu_custom_call.1']
    %9 = vsyncpa [#allocation3], 0
    loop: start=0, step=1, limit=4
    $region2: #{tpu_custom_call.1} parent=1 // loop_pre_header
      _
    $region3: #{tpu_custom_call.1} parent=1 // loop_header
      %s11 = sphi 0, %s15
      %p12 = scmp.ge.s32.totalorder %s11, 4
      %s21 = sphi 0, %s23
      %s24 = sphi 0, %s21
      %s25 = sphi 0, %s24
      %s41 = sphi 0, %s25
      %s45 = sphi 0, %s45
      %s47 = sphi 0, %s45
      %s48 = sphi 0, %s47
      %s62 = sphi 0, %s48
      %s66 = sphi 0, %s66
      %s68 = sphi 0, %s66
      %s69 = sphi 0, %s68
      %s83 = sphi 0, %s69
      %s87 = sphi 0, %s87
      %s89 = sphi 0, %s87
      %s90 = sphi 0, %s89
      %s104 = sphi 0, %s90
      %s110 = sphi 0, %s112
      %s113 = sphi 0, %s110
      %s114 = sphi 0, %s113
      %s130 = sphi 0, %s114
    $region4: #{tpu_custom_call.1} parent=1 // loop_header_branch
      %14 = sbr.rel (%p12) target = $region8
    $region5: #{tpu_custom_call.1} parent=1 // loop_body
      %s16 = ssub.s32 %s11, 1
      %s17 = ssub.s32 %s11, 2
      %s18 = sadd.s32 %s11, 1
      %s19 = ssub.s32 %s11, %s18
      %p20 = scmp.eq.s32.totalorder %s19, 0
      %s22 = sadd.s32 %s21, 1
      %s23 = scalar_select %p20, %s21, %s22
      %p26 = pneg %p20
      %p27 = scmp.eq.s32.totalorder %s11, 1
      %p28 = por %p26, %p27
      %p29 = scmp.ne.s32.totalorder %s21, %s24
      %p30 = scmp.eq.s32.totalorder %s11, 0
      %p31 = por %p29, %p30
      %p32 = scmp.ne.s32.totalorder %s21, %s24
      %p33 = scmp.eq.s32.totalorder %s16, 1
      %p34 = por %p32, %p33
      %p35 = scmp.ne.s32.totalorder %s24, %s25
      %p36 = scmp.eq.s32.totalorder %s16, 0
      %p37 = por %p35, %p36
      %p38 = scmp.ne.s32.totalorder %s24, %s25
      %p39 = scmp.eq.s32.totalorder %s17, 1
      %p40 = por %p38, %p39
      %p42 = scmp.ne.s32.totalorder %s25, %s41
      %p43 = scmp.eq.s32.totalorder %s17, 0
      %p44 = por %p42, %p43
      %s46 = sadd.s32 %s45, 1
      %p49 = scmp.eq.s32.totalorder %s11, 1
      %p50 = scmp.ne.s32.totalorder %s45, %s47
      %p51 = scmp.eq.s32.totalorder %s11, 0
      %p52 = por %p50, %p51
      %p53 = scmp.ne.s32.totalorder %s45, %s47
      %p54 = scmp.eq.s32.totalorder %s16, 1
      %p55 = por %p53, %p54
      %p56 = scmp.ne.s32.totalorder %s47, %s48
      %p57 = scmp.eq.s32.totalorder %s16, 0
      %p58 = por %p56, %p57
      %p59 = scmp.ne.s32.totalorder %s47, %s48
      %p60 = scmp.eq.s32.totalorder %s17, 1
      %p61 = por %p59, %p60
      %p63 = scmp.ne.s32.totalorder %s48, %s62
      %p64 = scmp.eq.s32.totalorder %s17, 0
      %p65 = por %p63, %p64
      %s67 = sadd.s32 %s66, 1
      %p70 = scmp.eq.s32.totalorder %s11, 1
      %p71 = scmp.ne.s32.totalorder %s66, %s68
      %p72 = scmp.eq.s32.totalorder %s11, 0
      %p73 = por %p71, %p72
      %p74 = scmp.ne.s32.totalorder %s66, %s68
      %p75 = scmp.eq.s32.totalorder %s16, 1
      %p76 = por %p74, %p75
      %p77 = scmp.ne.s32.totalorder %s68, %s69
      %p78 = scmp.eq.s32.totalorder %s16, 0
      %p79 = por %p77, %p78
      %p80 = scmp.ne.s32.totalorder %s68, %s69
      %p81 = scmp.eq.s32.totalorder %s17, 1
      %p82 = por %p80, %p81
      %p84 = scmp.ne.s32.totalorder %s69, %s83
      %p85 = scmp.eq.s32.totalorder %s17, 0
      %p86 = por %p84, %p85
      %s88 = sadd.s32 %s87, 1
      %p91 = scmp.eq.s32.totalorder %s11, 1
      %p92 = scmp.ne.s32.totalorder %s87, %s89
      %p93 = scmp.eq.s32.totalorder %s11, 0
      %p94 = por %p92, %p93
      %p95 = scmp.ne.s32.totalorder %s87, %s89
      %p96 = scmp.eq.s32.totalorder %s16, 1
      %p97 = por %p95, %p96
      %p98 = scmp.ne.s32.totalorder %s89, %s90
      %p99 = scmp.eq.s32.totalorder %s16, 0
      %p100 = por %p98, %p99
      %p101 = scmp.ne.s32.totalorder %s89, %s90
      %p102 = scmp.eq.s32.totalorder %s17, 1
      %p103 = por %p101, %p102
      %p105 = scmp.ne.s32.totalorder %s90, %s104
      %p106 = scmp.eq.s32.totalorder %s17, 0
      %p107 = por %p105, %p106
      %s108 = ssub.s32 %s11, %s18
      %p109 = scmp.eq.s32.totalorder %s108, 0
      %s111 = sadd.s32 %s110, 1
      %s112 = scalar_select %p109, %s110, %s111
      %p115 = pneg %p109
      %p116 = scmp.eq.s32.totalorder %s11, 1
      %p117 = por %p115, %p116
      %p118 = scmp.ne.s32.totalorder %s110, %s113
      %p119 = scmp.eq.s32.totalorder %s11, 0
      %p120 = por %p118, %p119
      %p121 = scmp.ne.s32.totalorder %s110, %s113
      %p122 = scmp.eq.s32.totalorder %s16, 1
      %p123 = por %p121, %p122
      %p124 = scmp.ne.s32.totalorder %s113, %s114
      %p125 = scmp.eq.s32.totalorder %s16, 0
      %p126 = por %p124, %p125
      %p127 = scmp.ne.s32.totalorder %s113, %s114
      %p128 = scmp.eq.s32.totalorder %s17, 1
      %p129 = por %p127, %p128
      %p131 = scmp.ne.s32.totalorder %s114, %s130
      %p132 = scmp.eq.s32.totalorder %s17, 0
      %p133 = por %p131, %p132
      %p134 = scmp.le.s32.totalorder 1, %s11
      %p135 = scmp.lt.s32.totalorder %s11, 3
      %p136 = pnand %p134, %p135
      %p137 = pneg %p136
      // Predicated region
      $region9: #{tpu_custom_call.1} parent=5 // pred_check
        _
      $region10: #{tpu_custom_call.1} parent=5 // pred_check_branch
        %139 = sbr.rel (%p136) target = $region12
      $region11: #{tpu_custom_call.1} parent=5 // pred_region
        %s140 = ssub.s32 %s11, 1
        // Predicated region
        $region13: #{tpu_custom_call.1} parent=11 // pred_check
          %p141 = pneg %p58
        $region14: #{tpu_custom_call.1} parent=11 // pred_check_branch
          %143 = sbr.rel (%p141) target = $region16
        $region15: #{tpu_custom_call.1} parent=11 // pred_region
          _
        $region16: #{tpu_custom_call.1} parent=11 // pred_fallthru
          _
        // Predicated region
        $region17: #{tpu_custom_call.1} parent=11 // pred_check
          %p144 = pneg %p79
        $region18: #{tpu_custom_call.1} parent=11 // pred_check_branch
          %146 = sbr.rel (%p144) target = $region20
        $region19: #{tpu_custom_call.1} parent=11 // pred_region
          %s148 = ssub.s32 8192, 8192
          %149 = vsyncadd [#allocation3], %s148
          %s150 = sshll.u32 [#allocation2], 4
          %s151 = int_to_ptr.vmem [resolvable:$true] %s150
          %156 = dma.hbm_to_vmem [thread:$0]  %s2, 8192, %s151, [#allocation3], 128, 128, 8
        $region20: #{tpu_custom_call.1} parent=11 // pred_fallthru
          _
        // Predicated region
        $region21: #{tpu_custom_call.1} parent=11 // pred_check
          %p157 = pneg %p100
        $region22: #{tpu_custom_call.1} parent=11 // pred_check_branch
          %159 = sbr.rel (%p157) target = $region24
        $region23: #{tpu_custom_call.1} parent=11 // pred_region
          _
        $region24: #{tpu_custom_call.1} parent=11 // pred_fallthru
          _
      $region12: #{tpu_custom_call.1} parent=5 // pred_fallthru
        _
      %p160 = scmp.lt.s32.totalorder %s11, 2
      // Predicated region
      $region25: #{tpu_custom_call.1} parent=5 // pred_check
        %p161 = pneg %p160
      $region26: #{tpu_custom_call.1} parent=5 // pred_check_branch
        %163 = sbr.rel (%p161) target = $region28
      $region27: #{tpu_custom_call.1} parent=5 // pred_region
        // Predicated region
        $region29: #{tpu_custom_call.1} parent=27 // pred_check
          %p164 = pneg %p31
        $region30: #{tpu_custom_call.1} parent=27 // pred_check_branch
          %166 = sbr.rel (%p164) target = $region32
        $region31: #{tpu_custom_call.1} parent=27 // pred_region
          %s167 = smul.u32 4, %s11
          %p168 = scmp.lt.s32.totalorder %s167, 7
          %s169 = scalar_select %p168, %s167, 7
          %s170 = smul.addr %s169, 8
          %s171 = scalar_lea.vmem %s0, %s170
          %s172 = smul.u32 4, %s11
        $region32: #{tpu_custom_call.1} parent=27 // pred_fallthru
          _
      $region28: #{tpu_custom_call.1} parent=5 // pred_fallthru
        _
      %p173 = scmp.le.s32.totalorder 1, %s11
      %p174 = scmp.lt.s32.totalorder %s11, 3
      %p175 = pnand %p173, %p174
      %p176 = pneg %p175
      // Predicated region
      $region33: #{tpu_custom_call.1} parent=5 // pred_check
        _
      $region34: #{tpu_custom_call.1} parent=5 // pred_check_branch
        %178 = sbr.rel (%p175) target = $region36
      $region35: #{tpu_custom_call.1} parent=5 // pred_region
        %s179 = ssub.s32 %s11, 1
        // Predicated region
        $region37: #{tpu_custom_call.1} parent=35 // pred_check
          %p180 = pneg %p79
        $region38: #{tpu_custom_call.1} parent=35 // pred_check_branch
          %182 = sbr.rel (%p180) target = $region40
        $region39: #{tpu_custom_call.1} parent=35 // pred_region
          %183 = dma.done [#allocation3], 8192
        $region40: #{tpu_custom_call.1} parent=35 // pred_fallthru
          _
        %s184 = smul.u32 4, %s16
        %p185 = scmp.lt.s32.totalorder %s184, 7
        %s186 = scalar_select %p185, %s184, 7
        %s187 = smul.addr %s186, 8
        %s188 = scalar_lea.vmem %s0, %s187
        %p189 = pneg %p37
        %p190 = pneg %p34
        %p191 = pneg %p58
        %p192 = pneg %p55
        %p193 = pneg %p79
        %p194 = pneg %p76
        %p195 = pneg %p100
        %p196 = pneg %p97
        %p197 = pneg %p126
        %p198 = pneg %p123
        %s199 = smul.u32 4, %s16
        %p200 = scmp.lt.s32.totalorder %s199, 7
        %s201 = scalar_select %p200, %s199, 7
        %s202 = smul.addr %s201, 8
        %s203 = scalar_lea.vmem %s4, %s202
        %s204 = smul.u32 4, %s16
        %p205 = scmp.lt.s32.totalorder %s204, 7
        %s206 = scalar_select %p205, %s204, 7
        %s207 = smul.addr %s206, 8
        %s208 = scalar_lea.vmem %s0, %s207
        %s209 = smul.u32 4, %s16
        %s210 = smul.u32 4, %s16
        %p211 = scmp.lt.s32.totalorder %s210, 7
        %s212 = scalar_select %p211, %s210, 7
        %s213 = smul.addr %s212, 8
        %s214 = scalar_lea.vmem %s4, %s213
        %s215 = smul.u32 4, %s16
        %v216 = vld [vmem:[%s208] sm:$0xff]
        %v217 = vld [vmem:[%s208 + $0x8] sm:$0xff]
        %v218 = vld [vmem:[%s208 + $0x10] sm:$0xff]
        %v219 = vld [vmem:[%s208 + $0x18] sm:$0xff]
        %v220 = vld [vmem:[%s1] sm:$0xff]
        %v221 = vld [vmem:[%s1 + $0x8] sm:$0xff]
        %v222 = vld [vmem:[%s1 + $0x10] sm:$0xff]
        %v223 = vld [vmem:[%s1 + $0x18] sm:$0x7]
        %v224 = vld [vmem:[%s3] sm:$0x1]
        %v226 = vlaneseq
        %v227 = vshrl.u32 %v226, 7
        %v228 = vsub.s32 0, %v227
        %v229 = vrot.slane %v224, %v228
        %vm231 = vcmask 220160
        %v233 = vsel %vm231, %v216, 0
        %v236 = vsel %vm231, %v217, 0
        %v239 = vsel %vm231, %v218, 0
        %v242 = vsel %vm231, %v219, 0
        %vm244 = vcmask 1042432
        %v246 = vsel %vm244, %v223, 0
        %248 = vmatprep.subr.mxu0 0.0
        %249 = vmatpush1.msra.mxu0 %v220
        %250 = vmatprep.subr.mxu0 0.0
        %251 = vmatpush1.msra.mxu0 %v221
        %252 = vmatprep.subr.mxu0 0.0
        %253 = vmatpush1.msra.mxu0 %v222
        %254 = vmatprep.subr.mxu0 0.0
        %255 = vmatpush1.msra.mxu0 %v246
        %256 = vmatprep.subr.mxu0 0.0
        %257 = vmatpush1.msra.mxu0 0.0
        %258 = vmatprep.subr.mxu0 0.0
        %259 = vmatpush1.msra.mxu0 0.0
        %260 = vmatprep.subr.mxu0 0.0
        %261 = vmatpush1.msra.mxu0 0.0
        %262 = vmatprep.subr.mxu0 0.0
        %263 = vmatpush1.msra.mxu0 0.0
        %264 = vmatprep.subr.mxu0 0.0
        %265 = vmatpush1.msra.mxu0 0.0
        %266 = vmatprep.subr.mxu0 0.0
        %267 = vmatpush1.msra.mxu0 0.0
        %268 = vmatprep.subr.mxu0 0.0
        %269 = vmatpush1.msra.mxu0 0.0
        %270 = vmatprep.subr.mxu0 0.0
        %271 = vmatpush1.msra.mxu0 0.0
        %272 = vmatprep.subr.mxu0 0.0
        %273 = vmatpush1.msra.mxu0 0.0
        %274 = vmatprep.subr.mxu0 0.0
        %275 = vmatpush1.msra.mxu0 0.0
        %276 = vmatprep.subr.mxu0 0.0
        %277 = vmatpush1.msra.mxu0 0.0
        %278 = vmatprep.subr.mxu0 0.0
        %279 = vmatpush1.msra.mxu0 0.0
        %280 = vmatprep.subr.mxu0 0.0
        %281 = vmatpush1.msra.mxu0 0.0
        %282 = vmatprep.subr.mxu0 0.0
        %283 = vmatpush1.msra.mxu0 0.0
        %284 = vmatprep.subr.mxu0 0.0
        %285 = vmatpush1.msra.mxu0 0.0
        %286 = vmatprep.subr.mxu0 0.0
        %287 = vmatpush1.msra.mxu0 0.0
        %288 = vmatprep.subr.mxu0 0.0
        %289 = vmatpush1.msra.mxu0 0.0
        %290 = vmatprep.subr.mxu0 0.0
        %291 = vmatpush1.msra.mxu0 0.0
        %292 = vmatprep.subr.mxu0 0.0
        %293 = vmatpush1.msra.mxu0 0.0
        %294 = vmatprep.subr.mxu0 0.0
        %295 = vmatpush1.msra.mxu0 0.0
        %296 = vmatprep.subr.mxu0 0.0
        %297 = vmatpush1.msra.mxu0 0.0
        %298 = vmatprep.subr.mxu0 0.0
        %299 = vmatpush1.msra.mxu0 0.0
        %300 = vmatprep.subr.mxu0 0.0
        %301 = vmatpush1.msra.mxu0 0.0
        %302 = vmatprep.subr.mxu0 0.0
        %303 = vmatpush1.msra.mxu0 0.0
        %304 = vmatprep.subr.mxu0 0.0
        %305 = vmatpush1.msra.mxu0 0.0
        %306 = vmatprep.subr.mxu0 0.0
        %307 = vmatpush1.msra.mxu0 0.0
        %308 = vmatprep.subr.mxu0 0.0
        %309 = vmatpush1.msra.mxu0 0.0
        %310 = vmatprep.subr.mxu0 0.0
        %311 = vmatpush1.msra.mxu0 0.0
        %312 = vmatprep.mubr.f32.mxu0 0.0
        %313 = vmatmul.mubr.f32.gmra.mrb[0].mxu0 %v233
        %v314 = vpop.f32.mrb[0].mxu0
        %v315 = vadd.f32 %v229, %v314
        %v316 = vpop.f32.mrb[0].mxu0
        %317 = vmatprep.mubr.f32.mxu0 0.0
        %318 = vmatmul.mubr.f32.gmra.mrb[0].mxu0 %v236
        %v319 = vpop.f32.mrb[0].mxu0
        %v320 = vadd.f32 %v229, %v319
        %v321 = vpop.f32.mrb[0].mxu0
        %322 = vmatprep.mubr.f32.mxu0 0.0
        %323 = vmatmul.mubr.f32.gmra.mrb[0].mxu0 %v239
        %v324 = vpop.f32.mrb[0].mxu0
        %v325 = vadd.f32 %v229, %v324
        %v326 = vpop.f32.mrb[0].mxu0
        %327 = vmatprep.mubr.f32.mxu0 0.0
        %328 = vmatmul.mubr.f32.gmra.mrb[0].mxu0 %v242
        %v329 = vpop.f32.mrb[0].mxu0
        %v330 = vadd.f32 %v229, %v329
        %v331 = vpop.f32.mrb[0].mxu0
        %332 = vdwg.mxu0
        %v333 = vmax.f32 %v315, 0.0
        %v334 = vmax.f32 %v320, 0.0
        %v335 = vmax.f32 %v325, 0.0
        %v336 = vmax.f32 %v330, 0.0
        %v337 = vld [vmem:[#allocation2] sm:$0xff]
        %v338 = vld [vmem:[#allocation2 + $0x8] sm:$0xff]
        %v339 = vld [vmem:[#allocation2 + $0x10] sm:$0xff]
        %v340 = vld [vmem:[#allocation2 + $0x18] sm:$0xff]
        %v341 = vld [vmem:[#allocation2 + $0x20] sm:$0xff]
        %v342 = vld [vmem:[#allocation2 + $0x28] sm:$0xff]
        %v343 = vld [vmem:[#allocation2 + $0x30] sm:$0xff]
        %v344 = vld [vmem:[#allocation2 + $0x38] sm:$0xff]
        %s345 = scalar_lea.vmem %s3, 1
        %v346 = vld [vmem:[%s345] sm:$0x1]
        %v348 = vlaneseq
        %v349 = vshrl.u32 %v348, 7
        %v350 = vsub.s32 0, %v349
        %v351 = vrot.slane %v346, %v350
        %vm353 = vcmask 523264
        %v355 = vsel %vm353, %v333, 0
        %v358 = vsel %vm353, %v334, 0
        %v361 = vsel %vm353, %v335, 0
        %v364 = vsel %vm353, %v336, 0
        %366 = vmatprep.subr.mxu0 0.0
        %367 = vmatpush1.msra.mxu0 %v337
        %368 = vmatprep.subr.mxu0 0.0
        %369 = vmatpush1.msra.mxu0 %v338
        %370 = vmatprep.subr.mxu0 0.0
        %371 = vmatpush1.msra.mxu0 %v339
        %372 = vmatprep.subr.mxu0 0.0
        %373 = vmatpush1.msra.mxu0 %v340
        %374 = vmatprep.subr.mxu0 0.0
        %375 = vmatpush1.msra.mxu0 %v341
        %376 = vmatprep.subr.mxu0 0.0
        %377 = vmatpush1.msra.mxu0 %v342
        %378 = vmatprep.subr.mxu0 0.0
        %379 = vmatpush1.msra.mxu0 %v343
        %380 = vmatprep.subr.mxu0 0.0
        %381 = vmatpush1.msra.mxu0 %v344
        %382 = vmatprep.subr.mxu0 0.0
        %383 = vmatpush1.msra.mxu0 0.0
        %384 = vmatprep.subr.mxu0 0.0
        %385 = vmatpush1.msra.mxu0 0.0
        %386 = vmatprep.subr.mxu0 0.0
        %387 = vmatpush1.msra.mxu0 0.0
        %388 = vmatprep.subr.mxu0 0.0
        %389 = vmatpush1.msra.mxu0 0.0
        %390 = vmatprep.subr.mxu0 0.0
        %391 = vmatpush1.msra.mxu0 0.0
        %392 = vmatprep.subr.mxu0 0.0
        %393 = vmatpush1.msra.mxu0 0.0
        %394 = vmatprep.subr.mxu0 0.0
        %395 = vmatpush1.msra.mxu0 0.0
        %396 = vmatprep.subr.mxu0 0.0
        %397 = vmatpush1.msra.mxu0 0.0
        %398 = vmatprep.subr.mxu0 0.0
        %399 = vmatpush1.msra.mxu0 0.0
        %400 = vmatprep.subr.mxu0 0.0
        %401 = vmatpush1.msra.mxu0 0.0
        %402 = vmatprep.subr.mxu0 0.0
        %403 = vmatpush1.msra.mxu0 0.0
        %404 = vmatprep.subr.mxu0 0.0
        %405 = vmatpush1.msra.mxu0 0.0
        %406 = vmatprep.subr.mxu0 0.0
        %407 = vmatpush1.msra.mxu0 0.0
        %408 = vmatprep.subr.mxu0 0.0
        %409 = vmatpush1.msra.mxu0 0.0
        %410 = vmatprep.subr.mxu0 0.0
        %411 = vmatpush1.msra.mxu0 0.0
        %412 = vmatprep.subr.mxu0 0.0
        %413 = vmatpush1.msra.mxu0 0.0
        %414 = vmatprep.subr.mxu0 0.0
        %415 = vmatpush1.msra.mxu0 0.0
        %416 = vmatprep.subr.mxu0 0.0
        %417 = vmatpush1.msra.mxu0 0.0
        %418 = vmatprep.subr.mxu0 0.0
        %419 = vmatpush1.msra.mxu0 0.0
        %420 = vmatprep.subr.mxu0 0.0
        %421 = vmatpush1.msra.mxu0 0.0
        %422 = vmatprep.subr.mxu0 0.0
        %423 = vmatpush1.msra.mxu0 0.0
        %424 = vmatprep.subr.mxu0 0.0
        %425 = vmatpush1.msra.mxu0 0.0
        %426 = vmatprep.subr.mxu0 0.0
        %427 = vmatpush1.msra.mxu0 0.0
        %428 = vmatprep.subr.mxu0 0.0
        %429 = vmatpush1.msra.mxu0 0.0
        %430 = vmatprep.mubr.f32.mxu0 0.0
        %431 = vmatmul.mubr.f32.gmra.mrb[0].mxu0 %v355
        %v432 = vpop.f32.mrb[0].mxu0
        %v433 = vadd.f32 %v351, %v432
        %v434 = vpop.f32.mrb[0].mxu0
        %435 = vmatprep.mubr.f32.mxu0 0.0
        %436 = vmatmul.mubr.f32.gmra.mrb[0].mxu0 %v358
        %v437 = vpop.f32.mrb[0].mxu0
        %v438 = vadd.f32 %v351, %v437
        %v439 = vpop.f32.mrb[0].mxu0
        %440 = vmatprep.mubr.f32.mxu0 0.0
        %441 = vmatmul.mubr.f32.gmra.mrb[0].mxu0 %v361
        %v442 = vpop.f32.mrb[0].mxu0
        %v443 = vadd.f32 %v351, %v442
        %v444 = vpop.f32.mrb[0].mxu0
        %445 = vmatprep.mubr.f32.mxu0 0.0
        %446 = vmatmul.mubr.f32.gmra.mrb[0].mxu0 %v364
        %v447 = vpop.f32.mrb[0].mxu0
        %v448 = vadd.f32 %v351, %v447
        %v449 = vpop.f32.mrb[0].mxu0
        %450 = vdwg.mxu0
        %v451 = vmax.f32 %v433, 0.0
        %v452 = vmax.f32 %v438, 0.0
        %v453 = vmax.f32 %v443, 0.0
        %v454 = vmax.f32 %v448, 0.0
        %s455 = scalar_lea.vmem [#allocation2], 64
        %v456 = vld [vmem:[%s455] sm:$0xff]
        %v457 = vld [vmem:[%s455 + $0x8] sm:$0xff]
        %v458 = vld [vmem:[%s455 + $0x10] sm:$0xff]
        %v459 = vld [vmem:[%s455 + $0x18] sm:$0xff]
        %v460 = vld [vmem:[%s455 + $0x20] sm:$0xff]
        %v461 = vld [vmem:[%s455 + $0x28] sm:$0xff]
        %v462 = vld [vmem:[%s455 + $0x30] sm:$0xff]
        %v463 = vld [vmem:[%s455 + $0x38] sm:$0xff]
        %s464 = scalar_lea.vmem %s3, 2
        %v465 = vld [vmem:[%s464] sm:$0x1]
        %v467 = vlaneseq
        %v468 = vshrl.u32 %v467, 7
        %v469 = vsub.s32 0, %v468
        %v470 = vrot.slane %v465, %v469
        %v473 = vsel %vm353, %v451, 0
        %v476 = vsel %vm353, %v452, 0
        %v479 = vsel %vm353, %v453, 0
        %v482 = vsel %vm353, %v454, 0
        %484 = vmatprep.subr.mxu0 0.0
        %485 = vmatpush1.msra.mxu0 %v456
        %486 = vmatprep.subr.mxu0 0.0
        %487 = vmatpush1.msra.mxu0 %v457
        %488 = vmatprep.subr.mxu0 0.0
        %489 = vmatpush1.msra.mxu0 %v458
        %490 = vmatprep.subr.mxu0 0.0
        %491 = vmatpush1.msra.mxu0 %v459
        %492 = vmatprep.subr.mxu0 0.0
        %493 = vmatpush1.msra.mxu0 %v460
        %494 = vmatprep.subr.mxu0 0.0
        %495 = vmatpush1.msra.mxu0 %v461
        %496 = vmatprep.subr.mxu0 0.0
        %497 = vmatpush1.msra.mxu0 %v462
        %498 = vmatprep.subr.mxu0 0.0
        %499 = vmatpush1.msra.mxu0 %v463
        %500 = vmatprep.subr.mxu0 0.0
        %501 = vmatpush1.msra.mxu0 0.0
        %502 = vmatprep.subr.mxu0 0.0
        %503 = vmatpush1.msra.mxu0 0.0
        %504 = vmatprep.subr.mxu0 0.0
        %505 = vmatpush1.msra.mxu0 0.0
        %506 = vmatprep.subr.mxu0 0.0
        %507 = vmatpush1.msra.mxu0 0.0
        %508 = vmatprep.subr.mxu0 0.0
        %509 = vmatpush1.msra.mxu0 0.0
        %510 = vmatprep.subr.mxu0 0.0
        %511 = vmatpush1.msra.mxu0 0.0
        %512 = vmatprep.subr.mxu0 0.0
        %513 = vmatpush1.msra.mxu0 0.0
        %514 = vmatprep.subr.mxu0 0.0
        %515 = vmatpush1.msra.mxu0 0.0
        %516 = vmatprep.subr.mxu0 0.0
        %517 = vmatpush1.msra.mxu0 0.0
        %518 = vmatprep.subr.mxu0 0.0
        %519 = vmatpush1.msra.mxu0 0.0
        %520 = vmatprep.subr.mxu0 0.0
        %521 = vmatpush1.msra.mxu0 0.0
        %522 = vmatprep.subr.mxu0 0.0
        %523 = vmatpush1.msra.mxu0 0.0
        %524 = vmatprep.subr.mxu0 0.0
        %525 = vmatpush1.msra.mxu0 0.0
        %526 = vmatprep.subr.mxu0 0.0
        %527 = vmatpush1.msra.mxu0 0.0
        %528 = vmatprep.subr.mxu0 0.0
        %529 = vmatpush1.msra.mxu0 0.0
        %530 = vmatprep.subr.mxu0 0.0
        %531 = vmatpush1.msra.mxu0 0.0
        %532 = vmatprep.subr.mxu0 0.0
        %533 = vmatpush1.msra.mxu0 0.0
        %534 = vmatprep.subr.mxu0 0.0
        %535 = vmatpush1.msra.mxu0 0.0
        %536 = vmatprep.subr.mxu0 0.0
        %537 = vmatpush1.msra.mxu0 0.0
        %538 = vmatprep.subr.mxu0 0.0
        %539 = vmatpush1.msra.mxu0 0.0
        %540 = vmatprep.subr.mxu0 0.0
        %541 = vmatpush1.msra.mxu0 0.0
        %542 = vmatprep.subr.mxu0 0.0
        %543 = vmatpush1.msra.mxu0 0.0
        %544 = vmatprep.subr.mxu0 0.0
        %545 = vmatpush1.msra.mxu0 0.0
        %546 = vmatprep.subr.mxu0 0.0
        %547 = vmatpush1.msra.mxu0 0.0
        %548 = vmatprep.mubr.f32.mxu0 0.0
        %549 = vmatmul.mubr.f32.gmra.mrb[0].mxu0 %v473
        %v550 = vpop.f32.mrb[0].mxu0
        %v551 = vadd.f32 %v470, %v550
        %v552 = vpop.f32.mrb[0].mxu0
        %553 = vmatprep.mubr.f32.mxu0 0.0
        %554 = vmatmul.mubr.f32.gmra.mrb[0].mxu0 %v476
        %v555 = vpop.f32.mrb[0].mxu0
        %v556 = vadd.f32 %v470, %v555
        %v557 = vpop.f32.mrb[0].mxu0
        %558 = vmatprep.mubr.f32.mxu0 0.0
        %559 = vmatmul.mubr.f32.gmra.mrb[0].mxu0 %v479
        %v560 = vpop.f32.mrb[0].mxu0
        %v561 = vadd.f32 %v470, %v560
        %v562 = vpop.f32.mrb[0].mxu0
        %563 = vmatprep.mubr.f32.mxu0 0.0
        %564 = vmatmul.mubr.f32.gmra.mrb[0].mxu0 %v482
        %v565 = vpop.f32.mrb[0].mxu0
        %v566 = vadd.f32 %v470, %v565
        %v567 = vpop.f32.mrb[0].mxu0
        %568 = vdwg.mxu0
        %v569 = vmax.f32 %v551, 0.0
        %v570 = vmax.f32 %v556, 0.0
        %v571 = vmax.f32 %v561, 0.0
        %v572 = vmax.f32 %v566, 0.0
        %s573 = scalar_lea.vmem [#allocation2], 128
        %v574 = vld [vmem:[%s573] sm:$0xff]
        %v575 = vld [vmem:[%s573 + $0x8] sm:$0xff]
        %v576 = vld [vmem:[%s573 + $0x10] sm:$0xff]
        %v577 = vld [vmem:[%s573 + $0x18] sm:$0xff]
        %v578 = vld [vmem:[%s573 + $0x20] sm:$0xff]
        %v579 = vld [vmem:[%s573 + $0x28] sm:$0xff]
        %v580 = vld [vmem:[%s573 + $0x30] sm:$0xff]
        %v581 = vld [vmem:[%s573 + $0x38] sm:$0xff]
        %s582 = scalar_lea.vmem %s3, 3
        %v583 = vld [vmem:[%s582] sm:$0x1]
        %v585 = vlaneseq
        %v586 = vshrl.u32 %v585, 7
        %v587 = vsub.s32 0, %v586
        %v588 = vrot.slane %v583, %v587
        %v591 = vsel %vm353, %v569, 0
        %v594 = vsel %vm353, %v570, 0
        %v597 = vsel %vm353, %v571, 0
        %v600 = vsel %vm353, %v572, 0
        %602 = vmatprep.subr.mxu0 0.0
        %603 = vmatpush1.msra.mxu0 %v574
        %604 = vmatprep.subr.mxu0 0.0
        %605 = vmatpush1.msra.mxu0 %v575
        %606 = vmatprep.subr.mxu0 0.0
        %607 = vmatpush1.msra.mxu0 %v576
        %608 = vmatprep.subr.mxu0 0.0
        %609 = vmatpush1.msra.mxu0 %v577
        %610 = vmatprep.subr.mxu0 0.0
        %611 = vmatpush1.msra.mxu0 %v578
        %612 = vmatprep.subr.mxu0 0.0
        %613 = vmatpush1.msra.mxu0 %v579
        %614 = vmatprep.subr.mxu0 0.0
        %615 = vmatpush1.msra.mxu0 %v580
        %616 = vmatprep.subr.mxu0 0.0
        %617 = vmatpush1.msra.mxu0 %v581
        %618 = vmatprep.subr.mxu0 0.0
        %619 = vmatpush1.msra.mxu0 0.0
        %620 = vmatprep.subr.mxu0 0.0
        %621 = vmatpush1.msra.mxu0 0.0
        %622 = vmatprep.subr.mxu0 0.0
        %623 = vmatpush1.msra.mxu0 0.0
        %624 = vmatprep.subr.mxu0 0.0
        %625 = vmatpush1.msra.mxu0 0.0
        %626 = vmatprep.subr.mxu0 0.0
        %627 = vmatpush1.msra.mxu0 0.0
        %628 = vmatprep.subr.mxu0 0.0
        %629 = vmatpush1.msra.mxu0 0.0
        %630 = vmatprep.subr.mxu0 0.0
        %631 = vmatpush1.msra.mxu0 0.0
        %632 = vmatprep.subr.mxu0 0.0
        %633 = vmatpush1.msra.mxu0 0.0
        %634 = vmatprep.subr.mxu0 0.0
        %635 = vmatpush1.msra.mxu0 0.0
        %636 = vmatprep.subr.mxu0 0.0
        %637 = vmatpush1.msra.mxu0 0.0
        %638 = vmatprep.subr.mxu0 0.0
        %639 = vmatpush1.msra.mxu0 0.0
        %640 = vmatprep.subr.mxu0 0.0
        %641 = vmatpush1.msra.mxu0 0.0
        %642 = vmatprep.subr.mxu0 0.0
        %643 = vmatpush1.msra.mxu0 0.0
        %644 = vmatprep.subr.mxu0 0.0
        %645 = vmatpush1.msra.mxu0 0.0
        %646 = vmatprep.subr.mxu0 0.0
        %647 = vmatpush1.msra.mxu0 0.0
        %648 = vmatprep.subr.mxu0 0.0
        %649 = vmatpush1.msra.mxu0 0.0
        %650 = vmatprep.subr.mxu0 0.0
        %651 = vmatpush1.msra.mxu0 0.0
        %652 = vmatprep.subr.mxu0 0.0
        %653 = vmatpush1.msra.mxu0 0.0
        %654 = vmatprep.subr.mxu0 0.0
        %655 = vmatpush1.msra.mxu0 0.0
        %656 = vmatprep.subr.mxu0 0.0
        %657 = vmatpush1.msra.mxu0 0.0
        %658 = vmatprep.subr.mxu0 0.0
        %659 = vmatpush1.msra.mxu0 0.0
        %660 = vmatprep.subr.mxu0 0.0
        %661 = vmatpush1.msra.mxu0 0.0
        %662 = vmatprep.subr.mxu0 0.0
        %663 = vmatpush1.msra.mxu0 0.0
        %664 = vmatprep.subr.mxu0 0.0
        %665 = vmatpush1.msra.mxu0 0.0
        %666 = vmatprep.mubr.f32.mxu0 0.0
        %667 = vmatmul.mubr.f32.gmra.mrb[0].mxu0 %v591
        %v668 = vpop.f32.mrb[0].mxu0
        %v669 = vadd.f32 %v588, %v668
        %v670 = vpop.f32.mrb[0].mxu0
        %671 = vmatprep.mubr.f32.mxu0 0.0
        %672 = vmatmul.mubr.f32.gmra.mrb[0].mxu0 %v594
        %v673 = vpop.f32.mrb[0].mxu0
        %v674 = vadd.f32 %v588, %v673
        %v675 = vpop.f32.mrb[0].mxu0
        %676 = vmatprep.mubr.f32.mxu0 0.0
        %677 = vmatmul.mubr.f32.gmra.mrb[0].mxu0 %v597
        %v678 = vpop.f32.mrb[0].mxu0
        %v679 = vadd.f32 %v588, %v678
        %v680 = vpop.f32.mrb[0].mxu0
        %681 = vmatprep.mubr.f32.mxu0 0.0
        %682 = vmatmul.mubr.f32.gmra.mrb[0].mxu0 %v600
        %v683 = vpop.f32.mrb[0].mxu0
        %v684 = vadd.f32 %v588, %v683
        %v685 = vpop.f32.mrb[0].mxu0
        %686 = vdwg.mxu0
        %v687 = vmax.f32 %v669, 0.0
        %v688 = vmax.f32 %v674, 0.0
        %v689 = vmax.f32 %v679, 0.0
        %v690 = vmax.f32 %v684, 0.0
        %s691 = scalar_lea.vmem [#allocation2], 192
        %v692 = vld [vmem:[%s691] sm:$0xff]
        %v693 = vld [vmem:[%s691 + $0x8] sm:$0xff]
        %v694 = vld [vmem:[%s691 + $0x10] sm:$0xff]
        %v695 = vld [vmem:[%s691 + $0x18] sm:$0xff]
        %v696 = vld [vmem:[%s691 + $0x20] sm:$0xff]
        %v697 = vld [vmem:[%s691 + $0x28] sm:$0xff]
        %v698 = vld [vmem:[%s691 + $0x30] sm:$0xff]
        %v699 = vld [vmem:[%s691 + $0x38] sm:$0xff]
        %s700 = scalar_lea.vmem %s3, 4
        %v701 = vld [vmem:[%s700] sm:$0x1]
        %v703 = vlaneseq
        %v704 = vshrl.u32 %v703, 7
        %v705 = vsub.s32 0, %v704
        %v706 = vrot.slane %v701, %v705
        %v709 = vsel %vm353, %v687, 0
        %v712 = vsel %vm353, %v688, 0
        %v715 = vsel %vm353, %v689, 0
        %v718 = vsel %vm353, %v690, 0
        %720 = vmatprep.subr.mxu0 0.0
        %721 = vmatpush1.msra.mxu0 %v692
        %722 = vmatprep.subr.mxu0 0.0
        %723 = vmatpush1.msra.mxu0 %v693
        %724 = vmatprep.subr.mxu0 0.0
        %725 = vmatpush1.msra.mxu0 %v694
        %726 = vmatprep.subr.mxu0 0.0
        %727 = vmatpush1.msra.mxu0 %v695
        %728 = vmatprep.subr.mxu0 0.0
        %729 = vmatpush1.msra.mxu0 %v696
        %730 = vmatprep.subr.mxu0 0.0
        %731 = vmatpush1.msra.mxu0 %v697
        %732 = vmatprep.subr.mxu0 0.0
        %733 = vmatpush1.msra.mxu0 %v698
        %734 = vmatprep.subr.mxu0 0.0
        %735 = vmatpush1.msra.mxu0 %v699
        %736 = vmatprep.subr.mxu0 0.0
        %737 = vmatpush1.msra.mxu0 0.0
        %738 = vmatprep.subr.mxu0 0.0
        %739 = vmatpush1.msra.mxu0 0.0
        %740 = vmatprep.subr.mxu0 0.0
        %741 = vmatpush1.msra.mxu0 0.0
        %742 = vmatprep.subr.mxu0 0.0
        %743 = vmatpush1.msra.mxu0 0.0
        %744 = vmatprep.subr.mxu0 0.0
        %745 = vmatpush1.msra.mxu0 0.0
        %746 = vmatprep.subr.mxu0 0.0
        %747 = vmatpush1.msra.mxu0 0.0
        %748 = vmatprep.subr.mxu0 0.0
        %749 = vmatpush1.msra.mxu0 0.0
        %750 = vmatprep.subr.mxu0 0.0
        %751 = vmatpush1.msra.mxu0 0.0
        %752 = vmatprep.subr.mxu0 0.0
        %753 = vmatpush1.msra.mxu0 0.0
        %754 = vmatprep.subr.mxu0 0.0
        %755 = vmatpush1.msra.mxu0 0.0
        %756 = vmatprep.subr.mxu0 0.0
        %757 = vmatpush1.msra.mxu0 0.0
        %758 = vmatprep.subr.mxu0 0.0
        %759 = vmatpush1.msra.mxu0 0.0
        %760 = vmatprep.subr.mxu0 0.0
        %761 = vmatpush1.msra.mxu0 0.0
        %762 = vmatprep.subr.mxu0 0.0
        %763 = vmatpush1.msra.mxu0 0.0
        %764 = vmatprep.subr.mxu0 0.0
        %765 = vmatpush1.msra.mxu0 0.0
        %766 = vmatprep.subr.mxu0 0.0
        %767 = vmatpush1.msra.mxu0 0.0
        %768 = vmatprep.subr.mxu0 0.0
        %769 = vmatpush1.msra.mxu0 0.0
        %770 = vmatprep.subr.mxu0 0.0
        %771 = vmatpush1.msra.mxu0 0.0
        %772 = vmatprep.subr.mxu0 0.0
        %773 = vmatpush1.msra.mxu0 0.0
        %774 = vmatprep.subr.mxu0 0.0
        %775 = vmatpush1.msra.mxu0 0.0
        %776 = vmatprep.subr.mxu0 0.0
        %777 = vmatpush1.msra.mxu0 0.0
        %778 = vmatprep.subr.mxu0 0.0
        %779 = vmatpush1.msra.mxu0 0.0
        %780 = vmatprep.subr.mxu0 0.0
        %781 = vmatpush1.msra.mxu0 0.0
        %782 = vmatprep.subr.mxu0 0.0
        %783 = vmatpush1.msra.mxu0 0.0
        %784 = vmatprep.mubr.f32.mxu0 0.0
        %785 = vmatmul.mubr.f32.gmra.mrb[0].mxu0 %v709
        %v786 = vpop.f32.mrb[0].mxu0
        %v787 = vadd.f32 %v706, %v786
        %v788 = vpop.f32.mrb[0].mxu0
        %789 = vmatprep.mubr.f32.mxu0 0.0
        %790 = vmatmul.mubr.f32.gmra.mrb[0].mxu0 %v712
        %v791 = vpop.f32.mrb[0].mxu0
        %v792 = vadd.f32 %v706, %v791
        %v793 = vpop.f32.mrb[0].mxu0
        %794 = vmatprep.mubr.f32.mxu0 0.0
        %795 = vmatmul.mubr.f32.gmra.mrb[0].mxu0 %v715
        %v796 = vpop.f32.mrb[0].mxu0
        %v797 = vadd.f32 %v706, %v796
        %v798 = vpop.f32.mrb[0].mxu0
        %799 = vmatprep.mubr.f32.mxu0 0.0
        %800 = vmatmul.mubr.f32.gmra.mrb[0].mxu0 %v718
        %v801 = vpop.f32.mrb[0].mxu0
        %v802 = vadd.f32 %v706, %v801
        %v803 = vpop.f32.mrb[0].mxu0
        %804 = vdwg.mxu0
        %v805 = vmax.f32 %v787, 0.0
        %v806 = vmax.f32 %v792, 0.0
        %v807 = vmax.f32 %v797, 0.0
        %v808 = vmax.f32 %v802, 0.0
        %s809 = scalar_lea.vmem [#allocation2], 256
        %v810 = vld [vmem:[%s809] sm:$0xff]
        %v811 = vld [vmem:[%s809 + $0x8] sm:$0xff]
        %v812 = vld [vmem:[%s809 + $0x10] sm:$0xff]
        %v813 = vld [vmem:[%s809 + $0x18] sm:$0xff]
        %v814 = vld [vmem:[%s809 + $0x20] sm:$0xff]
        %v815 = vld [vmem:[%s809 + $0x28] sm:$0xff]
        %v816 = vld [vmem:[%s809 + $0x30] sm:$0xff]
        %v817 = vld [vmem:[%s809 + $0x38] sm:$0xff]
        %s818 = scalar_lea.vmem %s3, 5
        %v819 = vld [vmem:[%s818] sm:$0x1]
        %v821 = vlaneseq
        %v822 = vshrl.u32 %v821, 7
        %v823 = vsub.s32 0, %v822
        %v824 = vrot.slane %v819, %v823
        %v827 = vsel %vm353, %v805, 0
        %v830 = vsel %vm353, %v806, 0
        %v833 = vsel %vm353, %v807, 0
        %v836 = vsel %vm353, %v808, 0
        %838 = vmatprep.subr.mxu0 0.0
        %839 = vmatpush1.msra.mxu0 %v810
        %840 = vmatprep.subr.mxu0 0.0
        %841 = vmatpush1.msra.mxu0 %v811
        %842 = vmatprep.subr.mxu0 0.0
        %843 = vmatpush1.msra.mxu0 %v812
        %844 = vmatprep.subr.mxu0 0.0
        %845 = vmatpush1.msra.mxu0 %v813
        %846 = vmatprep.subr.mxu0 0.0
        %847 = vmatpush1.msra.mxu0 %v814
        %848 = vmatprep.subr.mxu0 0.0
        %849 = vmatpush1.msra.mxu0 %v815
        %850 = vmatprep.subr.mxu0 0.0
        %851 = vmatpush1.msra.mxu0 %v816
        %852 = vmatprep.subr.mxu0 0.0
        %853 = vmatpush1.msra.mxu0 %v817
        %854 = vmatprep.subr.mxu0 0.0
        %855 = vmatpush1.msra.mxu0 0.0
        %856 = vmatprep.subr.mxu0 0.0
        %857 = vmatpush1.msra.mxu0 0.0
        %858 = vmatprep.subr.mxu0 0.0
        %859 = vmatpush1.msra.mxu0 0.0
        %860 = vmatprep.subr.mxu0 0.0
        %861 = vmatpush1.msra.mxu0 0.0
        %862 = vmatprep.subr.mxu0 0.0
        %863 = vmatpush1.msra.mxu0 0.0
        %864 = vmatprep.subr.mxu0 0.0
        %865 = vmatpush1.msra.mxu0 0.0
        %866 = vmatprep.subr.mxu0 0.0
        %867 = vmatpush1.msra.mxu0 0.0
        %868 = vmatprep.subr.mxu0 0.0
        %869 = vmatpush1.msra.mxu0 0.0
        %870 = vmatprep.subr.mxu0 0.0
        %871 = vmatpush1.msra.mxu0 0.0
        %872 = vmatprep.subr.mxu0 0.0
        %873 = vmatpush1.msra.mxu0 0.0
        %874 = vmatprep.subr.mxu0 0.0
        %875 = vmatpush1.msra.mxu0 0.0
        %876 = vmatprep.subr.mxu0 0.0
        %877 = vmatpush1.msra.mxu0 0.0
        %878 = vmatprep.subr.mxu0 0.0
        %879 = vmatpush1.msra.mxu0 0.0
        %880 = vmatprep.subr.mxu0 0.0
        %881 = vmatpush1.msra.mxu0 0.0
        %882 = vmatprep.subr.mxu0 0.0
        %883 = vmatpush1.msra.mxu0 0.0
        %884 = vmatprep.subr.mxu0 0.0
        %885 = vmatpush1.msra.mxu0 0.0
        %886 = vmatprep.subr.mxu0 0.0
        %887 = vmatpush1.msra.mxu0 0.0
        %888 = vmatprep.subr.mxu0 0.0
        %889 = vmatpush1.msra.mxu0 0.0
        %890 = vmatprep.subr.mxu0 0.0
        %891 = vmatpush1.msra.mxu0 0.0
        %892 = vmatprep.subr.mxu0 0.0
        %893 = vmatpush1.msra.mxu0 0.0
        %894 = vmatprep.subr.mxu0 0.0
        %895 = vmatpush1.msra.mxu0 0.0
        %896 = vmatprep.subr.mxu0 0.0
        %897 = vmatpush1.msra.mxu0 0.0
        %898 = vmatprep.subr.mxu0 0.0
        %899 = vmatpush1.msra.mxu0 0.0
        %900 = vmatprep.subr.mxu0 0.0
        %901 = vmatpush1.msra.mxu0 0.0
        %902 = vmatprep.mubr.f32.mxu0 0.0
        %903 = vmatmul.mubr.f32.gmra.mrb[0].mxu0 %v827
        %v904 = vpop.f32.mrb[0].mxu0
        %v905 = vadd.f32 %v824, %v904
        %v906 = vpop.f32.mrb[0].mxu0
        %907 = vmatprep.mubr.f32.mxu0 0.0
        %908 = vmatmul.mubr.f32.gmra.mrb[0].mxu0 %v830
        %v909 = vpop.f32.mrb[0].mxu0
        %v910 = vadd.f32 %v824, %v909
        %v911 = vpop.f32.mrb[0].mxu0
        %912 = vmatprep.mubr.f32.mxu0 0.0
        %913 = vmatmul.mubr.f32.gmra.mrb[0].mxu0 %v833
        %v914 = vpop.f32.mrb[0].mxu0
        %v915 = vadd.f32 %v824, %v914
        %v916 = vpop.f32.mrb[0].mxu0
        %917 = vmatprep.mubr.f32.mxu0 0.0
        %918 = vmatmul.mubr.f32.gmra.mrb[0].mxu0 %v836
        %v919 = vpop.f32.mrb[0].mxu0
        %v920 = vadd.f32 %v824, %v919
        %v921 = vpop.f32.mrb[0].mxu0
        %922 = vdwg.mxu0
        %s923 = scalar_lea.vmem [#allocation2], 320
        %v924 = vld [vmem:[%s923] sm:$0xff]
        %v925 = vld [vmem:[%s923 + $0x8] sm:$0xff]
        %v926 = vld [vmem:[%s923 + $0x10] sm:$0xff]
        %v927 = vld [vmem:[%s923 + $0x18] sm:$0xff]
        %v928 = vld [vmem:[%s923 + $0x20] sm:$0xff]
        %v929 = vld [vmem:[%s923 + $0x28] sm:$0xff]
        %v930 = vld [vmem:[%s923 + $0x30] sm:$0xff]
        %v931 = vld [vmem:[%s923 + $0x38] sm:$0xff]
        %s932 = scalar_lea.vmem %s3, 6
        %v933 = vld [vmem:[%s932] sm:$0x1]
        %v935 = vlaneseq
        %v936 = vshrl.u32 %v935, 7
        %v937 = vsub.s32 0, %v936
        %v938 = vrot.slane %v933, %v937
        %940 = vmatprep.subr.mxu0 0.0
        %941 = vmatpush1.msra.mxu0 %v924
        %942 = vmatprep.subr.mxu0 0.0
        %943 = vmatpush1.msra.mxu0 %v925
        %944 = vmatprep.subr.mxu0 0.0
        %945 = vmatpush1.msra.mxu0 %v926
        %946 = vmatprep.subr.mxu0 0.0
        %947 = vmatpush1.msra.mxu0 %v927
        %948 = vmatprep.subr.mxu0 0.0
        %949 = vmatpush1.msra.mxu0 %v928
        %950 = vmatprep.subr.mxu0 0.0
        %951 = vmatpush1.msra.mxu0 %v929
        %952 = vmatprep.subr.mxu0 0.0
        %953 = vmatpush1.msra.mxu0 %v930
        %954 = vmatprep.subr.mxu0 0.0
        %955 = vmatpush1.msra.mxu0 %v931
        %956 = vmatprep.subr.mxu0 0.0
        %957 = vmatpush1.msra.mxu0 0.0
        %958 = vmatprep.subr.mxu0 0.0
        %959 = vmatpush1.msra.mxu0 0.0
        %960 = vmatprep.subr.mxu0 0.0
        %961 = vmatpush1.msra.mxu0 0.0
        %962 = vmatprep.subr.mxu0 0.0
        %963 = vmatpush1.msra.mxu0 0.0
        %964 = vmatprep.subr.mxu0 0.0
        %965 = vmatpush1.msra.mxu0 0.0
        %966 = vmatprep.subr.mxu0 0.0
        %967 = vmatpush1.msra.mxu0 0.0
        %968 = vmatprep.subr.mxu0 0.0
        %969 = vmatpush1.msra.mxu0 0.0
        %970 = vmatprep.subr.mxu0 0.0
        %971 = vmatpush1.msra.mxu0 0.0
        %972 = vmatprep.subr.mxu0 0.0
        %973 = vmatpush1.msra.mxu0 0.0
        %974 = vmatprep.subr.mxu0 0.0
        %975 = vmatpush1.msra.mxu0 0.0
        %976 = vmatprep.subr.mxu0 0.0
        %977 = vmatpush1.msra.mxu0 0.0
        %978 = vmatprep.subr.mxu0 0.0
        %979 = vmatpush1.msra.mxu0 0.0
        %980 = vmatprep.subr.mxu0 0.0
        %981 = vmatpush1.msra.mxu0 0.0
        %982 = vmatprep.subr.mxu0 0.0
        %983 = vmatpush1.msra.mxu0 0.0
        %984 = vmatprep.subr.mxu0 0.0
        %985 = vmatpush1.msra.mxu0 0.0
        %986 = vmatprep.subr.mxu0 0.0
        %987 = vmatpush1.msra.mxu0 0.0
        %988 = vmatprep.subr.mxu0 0.0
        %989 = vmatpush1.msra.mxu0 0.0
        %990 = vmatprep.subr.mxu0 0.0
        %991 = vmatpush1.msra.mxu0 0.0
        %992 = vmatprep.subr.mxu0 0.0
        %993 = vmatpush1.msra.mxu0 0.0
        %994 = vmatprep.subr.mxu0 0.0
        %995 = vmatpush1.msra.mxu0 0.0
        %996 = vmatprep.subr.mxu0 0.0
        %997 = vmatpush1.msra.mxu0 0.0
        %998 = vmatprep.subr.mxu0 0.0
        %999 = vmatpush1.msra.mxu0 0.0
        %1000 = vmatprep.subr.mxu0 0.0
        %1001 = vmatpush1.msra.mxu0 0.0
        %1002 = vmatprep.subr.mxu0 0.0
        %1003 = vmatpush1.msra.mxu0 0.0
        %1004 = vmatprep.mubr.f32.mxu0 0.0
        %1005 = vmatmul.mubr.f32.gmra.mrb[0].mxu0 %v827
        %v1006 = vpop.f32.mrb[0].mxu0
        %v1007 = vadd.f32 %v938, %v1006
        %v1008 = vpop.f32.mrb[0].mxu0
        %1009 = vmatprep.mubr.f32.mxu0 0.0
        %1010 = vmatmul.mubr.f32.gmra.mrb[0].mxu0 %v830
        %v1011 = vpop.f32.mrb[0].mxu0
        %v1012 = vadd.f32 %v938, %v1011
        %v1013 = vpop.f32.mrb[0].mxu0
        %1014 = vmatprep.mubr.f32.mxu0 0.0
        %1015 = vmatmul.mubr.f32.gmra.mrb[0].mxu0 %v833
        %v1016 = vpop.f32.mrb[0].mxu0
        %v1017 = vadd.f32 %v938, %v1016
        %v1018 = vpop.f32.mrb[0].mxu0
        %1019 = vmatprep.mubr.f32.mxu0 0.0
        %1020 = vmatmul.mubr.f32.gmra.mrb[0].mxu0 %v836
        %v1021 = vpop.f32.mrb[0].mxu0
        %v1022 = vadd.f32 %v938, %v1021
        %v1023 = vpop.f32.mrb[0].mxu0
        %1024 = vdwg.mxu0
        %v1025 = vmul.f32 %v905, %v1007
        %v1026 = vmul.f32 %v910, %v1012
        %v1027 = vmul.f32 %v915, %v1017
        %v1028 = vmul.f32 %v920, %v1022
        %s1029 = scalar_lea.vmem [#allocation2], 384
        %v1030 = vld [vmem:[%s1029] sm:$0xff]
        %v1031 = vld [vmem:[%s1029 + $0x8] sm:$0xff]
        %v1032 = vld [vmem:[%s1029 + $0x10] sm:$0xff]
        %v1033 = vld [vmem:[%s1029 + $0x18] sm:$0xff]
        %v1034 = vld [vmem:[%s1029 + $0x20] sm:$0xff]
        %v1035 = vld [vmem:[%s1029 + $0x28] sm:$0xff]
        %v1036 = vld [vmem:[%s1029 + $0x30] sm:$0xff]
        %v1037 = vld [vmem:[%s1029 + $0x38] sm:$0xff]
        %s1038 = scalar_lea.vmem %s3, 7
        %v1039 = vld [vmem:[%s1038] sm:$0x1]
        %v1041 = vlaneseq
        %v1042 = vshrl.u32 %v1041, 7
        %v1043 = vsub.s32 0, %v1042
        %v1044 = vrot.slane %v1039, %v1043
        %v1047 = vsel %vm353, %v1025, 0
        %v1050 = vsel %vm353, %v1026, 0
        %v1053 = vsel %vm353, %v1027, 0
        %v1056 = vsel %vm353, %v1028, 0
        %1058 = vmatprep.subr.mxu0 0.0
        %1059 = vmatpush1.msra.mxu0 %v1030
        %1060 = vmatprep.subr.mxu0 0.0
        %1061 = vmatpush1.msra.mxu0 %v1031
        %1062 = vmatprep.subr.mxu0 0.0
        %1063 = vmatpush1.msra.mxu0 %v1032
        %1064 = vmatprep.subr.mxu0 0.0
        %1065 = vmatpush1.msra.mxu0 %v1033
        %1066 = vmatprep.subr.mxu0 0.0
        %1067 = vmatpush1.msra.mxu0 %v1034
        %1068 = vmatprep.subr.mxu0 0.0
        %1069 = vmatpush1.msra.mxu0 %v1035
        %1070 = vmatprep.subr.mxu0 0.0
        %1071 = vmatpush1.msra.mxu0 %v1036
        %1072 = vmatprep.subr.mxu0 0.0
        %1073 = vmatpush1.msra.mxu0 %v1037
        %1074 = vmatprep.subr.mxu0 0.0
        %1075 = vmatpush1.msra.mxu0 0.0
        %1076 = vmatprep.subr.mxu0 0.0
        %1077 = vmatpush1.msra.mxu0 0.0
        %1078 = vmatprep.subr.mxu0 0.0
        %1079 = vmatpush1.msra.mxu0 0.0
        %1080 = vmatprep.subr.mxu0 0.0
        %1081 = vmatpush1.msra.mxu0 0.0
        %1082 = vmatprep.subr.mxu0 0.0
        %1083 = vmatpush1.msra.mxu0 0.0
        %1084 = vmatprep.subr.mxu0 0.0
        %1085 = vmatpush1.msra.mxu0 0.0
        %1086 = vmatprep.subr.mxu0 0.0
        %1087 = vmatpush1.msra.mxu0 0.0
        %1088 = vmatprep.subr.mxu0 0.0
        %1089 = vmatpush1.msra.mxu0 0.0
        %1090 = vmatprep.subr.mxu0 0.0
        %1091 = vmatpush1.msra.mxu0 0.0
        %1092 = vmatprep.subr.mxu0 0.0
        %1093 = vmatpush1.msra.mxu0 0.0
        %1094 = vmatprep.subr.mxu0 0.0
        %1095 = vmatpush1.msra.mxu0 0.0
        %1096 = vmatprep.subr.mxu0 0.0
        %1097 = vmatpush1.msra.mxu0 0.0
        %1098 = vmatprep.subr.mxu0 0.0
        %1099 = vmatpush1.msra.mxu0 0.0
        %1100 = vmatprep.subr.mxu0 0.0
        %1101 = vmatpush1.msra.mxu0 0.0
        %1102 = vmatprep.subr.mxu0 0.0
        %1103 = vmatpush1.msra.mxu0 0.0
        %1104 = vmatprep.subr.mxu0 0.0
        %1105 = vmatpush1.msra.mxu0 0.0
        %1106 = vmatprep.subr.mxu0 0.0
        %1107 = vmatpush1.msra.mxu0 0.0
        %1108 = vmatprep.subr.mxu0 0.0
        %1109 = vmatpush1.msra.mxu0 0.0
        %1110 = vmatprep.subr.mxu0 0.0
        %1111 = vmatpush1.msra.mxu0 0.0
        %1112 = vmatprep.subr.mxu0 0.0
        %1113 = vmatpush1.msra.mxu0 0.0
        %1114 = vmatprep.subr.mxu0 0.0
        %1115 = vmatpush1.msra.mxu0 0.0
        %1116 = vmatprep.subr.mxu0 0.0
        %1117 = vmatpush1.msra.mxu0 0.0
        %1118 = vmatprep.subr.mxu0 0.0
        %1119 = vmatpush1.msra.mxu0 0.0
        %1120 = vmatprep.subr.mxu0 0.0
        %1121 = vmatpush1.msra.mxu0 0.0
        %1122 = vmatprep.mubr.f32.mxu0 0.0
        %1123 = vmatmul.mubr.f32.gmra.mrb[0].mxu0 %v1047
        %v1124 = vpop.f32.mrb[0].mxu0
        %v1125 = vadd.f32 %v1044, %v1124
        %v1126 = vpop.f32.mrb[0].mxu0
        %1127 = vmatprep.mubr.f32.mxu0 0.0
        %1128 = vmatmul.mubr.f32.gmra.mrb[0].mxu0 %v1050
        %v1129 = vpop.f32.mrb[0].mxu0
        %v1130 = vadd.f32 %v1044, %v1129
        %v1131 = vpop.f32.mrb[0].mxu0
        %1132 = vmatprep.mubr.f32.mxu0 0.0
        %1133 = vmatmul.mubr.f32.gmra.mrb[0].mxu0 %v1053
        %v1134 = vpop.f32.mrb[0].mxu0
        %v1135 = vadd.f32 %v1044, %v1134
        %v1136 = vpop.f32.mrb[0].mxu0
        %1137 = vmatprep.mubr.f32.mxu0 0.0
        %1138 = vmatmul.mubr.f32.gmra.mrb[0].mxu0 %v1056
        %v1139 = vpop.f32.mrb[0].mxu0
        %v1140 = vadd.f32 %v1044, %v1139
        %v1141 = vpop.f32.mrb[0].mxu0
        %1142 = vdwg.mxu0
        %v1143 = vmax.f32 %v1125, 0.0
        %v1144 = vmax.f32 %v1130, 0.0
        %v1145 = vmax.f32 %v1135, 0.0
        %v1146 = vmax.f32 %v1140, 0.0
        %s1147 = scalar_lea.vmem [#allocation2], 448
        %v1148 = vld [vmem:[%s1147] sm:$0xff]
        %v1149 = vld [vmem:[%s1147 + $0x8] sm:$0xff]
        %v1150 = vld [vmem:[%s1147 + $0x10] sm:$0xff]
        %v1151 = vld [vmem:[%s1147 + $0x18] sm:$0xff]
        %v1152 = vld [vmem:[%s1147 + $0x20] sm:$0xff]
        %v1153 = vld [vmem:[%s1147 + $0x28] sm:$0xff]
        %v1154 = vld [vmem:[%s1147 + $0x30] sm:$0xff]
        %v1155 = vld [vmem:[%s1147 + $0x38] sm:$0xff]
        %s1156 = scalar_lea.vmem %s3, 8
        %v1157 = vld [vmem:[%s1156] sm:$0x1]
        %v1159 = vlaneseq
        %v1160 = vshrl.u32 %v1159, 7
        %v1161 = vsub.s32 0, %v1160
        %v1162 = vrot.slane %v1157, %v1161
        %v1165 = vsel %vm353, %v1143, 0
        %v1168 = vsel %vm353, %v1144, 0
        %v1171 = vsel %vm353, %v1145, 0
        %v1174 = vsel %vm353, %v1146, 0
        %1176 = vmatprep.subr.mxu0 0.0
        %1177 = vmatpush1.msra.mxu0 %v1148
        %1178 = vmatprep.subr.mxu0 0.0
        %1179 = vmatpush1.msra.mxu0 %v1149
        %1180 = vmatprep.subr.mxu0 0.0
        %1181 = vmatpush1.msra.mxu0 %v1150
        %1182 = vmatprep.subr.mxu0 0.0
        %1183 = vmatpush1.msra.mxu0 %v1151
        %1184 = vmatprep.subr.mxu0 0.0
        %1185 = vmatpush1.msra.mxu0 %v1152
        %1186 = vmatprep.subr.mxu0 0.0
        %1187 = vmatpush1.msra.mxu0 %v1153
        %1188 = vmatprep.subr.mxu0 0.0
        %1189 = vmatpush1.msra.mxu0 %v1154
        %1190 = vmatprep.subr.mxu0 0.0
        %1191 = vmatpush1.msra.mxu0 %v1155
        %1192 = vmatprep.subr.mxu0 0.0
        %1193 = vmatpush1.msra.mxu0 0.0
        %1194 = vmatprep.subr.mxu0 0.0
        %1195 = vmatpush1.msra.mxu0 0.0
        %1196 = vmatprep.subr.mxu0 0.0
        %1197 = vmatpush1.msra.mxu0 0.0
        %1198 = vmatprep.subr.mxu0 0.0
        %1199 = vmatpush1.msra.mxu0 0.0
        %1200 = vmatprep.subr.mxu0 0.0
        %1201 = vmatpush1.msra.mxu0 0.0
        %1202 = vmatprep.subr.mxu0 0.0
        %1203 = vmatpush1.msra.mxu0 0.0
        %1204 = vmatprep.subr.mxu0 0.0
        %1205 = vmatpush1.msra.mxu0 0.0
        %1206 = vmatprep.subr.mxu0 0.0
        %1207 = vmatpush1.msra.mxu0 0.0
        %1208 = vmatprep.subr.mxu0 0.0
        %1209 = vmatpush1.msra.mxu0 0.0
        %1210 = vmatprep.subr.mxu0 0.0
        %1211 = vmatpush1.msra.mxu0 0.0
        %1212 = vmatprep.subr.mxu0 0.0
        %1213 = vmatpush1.msra.mxu0 0.0
        %1214 = vmatprep.subr.mxu0 0.0
        %1215 = vmatpush1.msra.mxu0 0.0
        %1216 = vmatprep.subr.mxu0 0.0
        %1217 = vmatpush1.msra.mxu0 0.0
        %1218 = vmatprep.subr.mxu0 0.0
        %1219 = vmatpush1.msra.mxu0 0.0
        %1220 = vmatprep.subr.mxu0 0.0
        %1221 = vmatpush1.msra.mxu0 0.0
        %1222 = vmatprep.subr.mxu0 0.0
        %1223 = vmatpush1.msra.mxu0 0.0
        %1224 = vmatprep.subr.mxu0 0.0
        %1225 = vmatpush1.msra.mxu0 0.0
        %1226 = vmatprep.subr.mxu0 0.0
        %1227 = vmatpush1.msra.mxu0 0.0
        %1228 = vmatprep.subr.mxu0 0.0
        %1229 = vmatpush1.msra.mxu0 0.0
        %1230 = vmatprep.subr.mxu0 0.0
        %1231 = vmatpush1.msra.mxu0 0.0
        %1232 = vmatprep.subr.mxu0 0.0
        %1233 = vmatpush1.msra.mxu0 0.0
        %1234 = vmatprep.subr.mxu0 0.0
        %1235 = vmatpush1.msra.mxu0 0.0
        %1236 = vmatprep.subr.mxu0 0.0
        %1237 = vmatpush1.msra.mxu0 0.0
        %1238 = vmatprep.subr.mxu0 0.0
        %1239 = vmatpush1.msra.mxu0 0.0
        %1240 = vmatprep.mubr.f32.mxu0 0.0
        %1241 = vmatmul.mubr.f32.gmra.mrb[0].mxu0 %v1165
        %v1242 = vpop.f32.mrb[0].mxu0
        %v1243 = vadd.f32 %v1162, %v1242
        %v1244 = vpop.f32.mrb[0].mxu0
        %1245 = vmatprep.mubr.f32.mxu0 0.0
        %1246 = vmatmul.mubr.f32.gmra.mrb[0].mxu0 %v1168
        %v1247 = vpop.f32.mrb[0].mxu0
        %v1248 = vadd.f32 %v1162, %v1247
        %v1249 = vpop.f32.mrb[0].mxu0
        %1250 = vmatprep.mubr.f32.mxu0 0.0
        %1251 = vmatmul.mubr.f32.gmra.mrb[0].mxu0 %v1171
        %v1252 = vpop.f32.mrb[0].mxu0
        %v1253 = vadd.f32 %v1162, %v1252
        %v1254 = vpop.f32.mrb[0].mxu0
        %1255 = vmatprep.mubr.f32.mxu0 0.0
        %1256 = vmatmul.mubr.f32.gmra.mrb[0].mxu0 %v1174
        %v1257 = vpop.f32.mrb[0].mxu0
        %v1258 = vadd.f32 %v1162, %v1257
        %v1259 = vpop.f32.mrb[0].mxu0
        %1260 = vdwg.mxu0
        %vm1261 = vcmask 23552
        %1262 = vst.msk [vmem:[%s214] sm:$0xff] %vm1261, %v1243
        %1263 = vst.msk [vmem:[%s214 + $0x8] sm:$0xff] %vm1261, %v1248
        %1264 = vst.msk [vmem:[%s214 + $0x10] sm:$0xff] %vm1261, %v1253
        %1265 = vst.msk [vmem:[%s214 + $0x18] sm:$0xff] %vm1261, %v1258
        %s1266 = smul.u32 4, %s16
        %p1267 = scmp.lt.s32.totalorder %s1266, 7
        %s1268 = scalar_select %p1267, %s1266, 7
        %s1269 = smul.addr %s1268, 8
        %s1270 = scalar_lea.vmem %s4, %s1269
        // Predicated region
        $region41: #{tpu_custom_call.1} parent=35 // pred_check
          %p1271 = pneg %p123
        $region42: #{tpu_custom_call.1} parent=35 // pred_check_branch
          %1273 = sbr.rel (%p1271) target = $region44
        $region43: #{tpu_custom_call.1} parent=35 // pred_region
          %s1274 = smul.u32 4, %s16
        $region44: #{tpu_custom_call.1} parent=35 // pred_fallthru
          _
      $region36: #{tpu_custom_call.1} parent=5 // pred_fallthru
        _
      %p1275 = scmp.le.s32.totalorder 2, %s11
      // Predicated region
      $region45: #{tpu_custom_call.1} parent=5 // pred_check
        %p1276 = pneg %p1275
      $region46: #{tpu_custom_call.1} parent=5 // pred_check_branch
        %1278 = sbr.rel (%p1276) target = $region48
      $region47: #{tpu_custom_call.1} parent=5 // pred_region
        %s1279 = ssub.s32 %s11, 2
        // Predicated region
        $region49: #{tpu_custom_call.1} parent=47 // pred_check
          %p1280 = pneg %p129
        $region50: #{tpu_custom_call.1} parent=47 // pred_check_branch
          %1282 = sbr.rel (%p1280) target = $region52
        $region51: #{tpu_custom_call.1} parent=47 // pred_region
          %s1283 = smul.u32 4, %s17
          %p1284 = scmp.lt.s32.totalorder %s1283, 7
          %s1285 = scalar_select %p1284, %s1283, 7
          %s1286 = smul.addr %s1285, 8
          %s1287 = scalar_lea.vmem %s4, %s1286
        $region52: #{tpu_custom_call.1} parent=47 // pred_fallthru
          _
      $region48: #{tpu_custom_call.1} parent=5 // pred_fallthru
        _
    $region6: #{tpu_custom_call.1} parent=1 // loop_footer
      %s15 = sadd.s32 1, %s11
    $region7: #{tpu_custom_call.1} parent=1 // loop_footer_branch
      %10 = sbr.rel target = $region3
    $region8: #{tpu_custom_call.1} parent=1 // loop_exit
      _
    %1288 = vsyncpa [#allocation3], 1
    %s1289 = scalar_lea.sflag [#allocation3], 1
    %1290 = vsyncpa %s1289, 1

</llo_original>
